<compile_context>
chip_gen: v7x
topology: tpu7x:2x2x1
jax: 0.10.0
libtpu: 0.0.40
codegen_flags: <defaults>
</compile_context>

<pallas_src>
import functools

import jax
import jax.numpy as jnp
from jax.experimental import pallas as pl
from jax.experimental.pallas import tpu as pltpu


# ---------------------------------------------------------------------------
# Fused Pallas kernel: sensing -> noise -> (KronConv + pinv inverse) -> 1x1 conv
# ---------------------------------------------------------------------------

def _bsr_kernel(bayer_ref, noise_ref, phi_l_ref, phi_rT_ref, pinv_l_ref,
                pinv_rT_ref, wl_ref, wrT_ref, wconv_ref,
                meas_ref, noisy_ref, out_ref):
    f32 = jnp.float32
    C, Hb, Wb = bayer_ref.shape[1], bayer_ref.shape[2], bayer_ref.shape[3]
    Mh, Mw = noise_ref.shape[2], noise_ref.shape[3]
    n_out = out_ref.shape[1]

    bayer = bayer_ref[0]                                    # (C, Hb, Wb)
    phi_l = phi_l_ref[...]                                  # (Mh, Hb)

    # --- FlatCamSampSim: meas[c] = PhiL @ bayer[c] @ PhiR^T -----------------
    # Right-multiply is shared across channels -> one batched MXU matmul.
    t1 = jnp.dot(bayer.reshape(C * Hb, Wb), phi_rT_ref[...],
                 preferred_element_type=f32)                # (C*Hb, Mw)
    for c in range(C):
        meas_ref[0, c] = jnp.dot(phi_l, t1[c * Hb:(c + 1) * Hb, :],
                                 preferred_element_type=f32)

    # --- AddNoise (noise is pre-scaled by sigma in the wrapper) -------------
    noisy = meas_ref[0] + noise_ref[0]                      # (C, Mh, Mw) == y
    noisy_ref[0] = noisy

    # --- FlatCamSimInverse right-multiply, batched over channels ------------
    pinv_l = pinv_l_ref[...]                                # (Hb, Mh)
    t2 = jnp.dot(noisy.reshape(C * Mh, Mw), pinv_rT_ref[...],
                 preferred_element_type=f32)                # (C*Mh, Wb)

    # --- per-channel KronConv + inverse, fused 1x1 conv accumulation --------
    outs = [jnp.zeros((Hb, Wb), f32) for _ in range(n_out)]
    for c in range(C):
        y_c = noisy[c]                                      # (Mh, Mw)
        rec = jnp.dot(jnp.dot(wl_ref[c], y_c, preferred_element_type=f32),
                      wrT_ref[c], preferred_element_type=f32)
        rec = jnp.maximum(rec, 0.0)                         # KronConv act (ReLU)
        inv = jnp.dot(pinv_l, t2[c * Mh:(c + 1) * Mh, :],
                      preferred_element_type=f32)           # (Hb, Wb)
        s_c = rec + inv
        for o in range(n_out):
            outs[o] = outs[o] + wconv_ref[o, c] * s_c       # scalar from SMEM
    for o in range(n_out):
        out_ref[0, o] = outs[o]


def bsr_fused(bayer, noise, phi_l, phi_rT, pinv_l, pinv_rT, wl, wrT, w_conv):
    B, C, Hb, Wb = bayer.shape
    Mh, Mw = noise.shape[2], noise.shape[3]
    n_out = w_conv.shape[0]

    flops = 2 * B * C * (
        Hb * Wb * Mw                      # sensing right-mult
        + Mh * Hb * Mw                    # sensing left-mult
        + Mh * Mw * Wb                    # pinv right-mult
        + Hb * Mh * Wb                    # pinv left-mult
        + Hb * Mh * Mw + Hb * Mw * Wb     # KronConv
        + n_out * Hb * Wb                 # 1x1 channel mix
    )
    args = (bayer, noise, phi_l, phi_rT, pinv_l, pinv_rT, wl, wrT, w_conv)
    out_bytes = 4 * B * (2 * C * Mh * Mw + n_out * Hb * Wb)
    bytes_accessed = sum(int(a.size) * 4 for a in args) + out_bytes

    return pl.pallas_call(
        _bsr_kernel,
        out_shape=(
            jax.ShapeDtypeStruct((B, C, Mh, Mw), jnp.float32),     # x_sim (Bayer)
            jax.ShapeDtypeStruct((B, C, Mh, Mw), jnp.float32),     # x_noise (Bayer)
            jax.ShapeDtypeStruct((B, n_out, Hb, Wb), jnp.float32), # conv output
        ),
        grid_spec=pl.GridSpec(
            grid=(B,),
            in_specs=[
                pl.BlockSpec((1, C, Hb, Wb), lambda b: (b, 0, 0, 0)),  # bayer
                pl.BlockSpec((1, C, Mh, Mw), lambda b: (b, 0, 0, 0)),  # noise
                pl.BlockSpec((Mh, Hb), lambda b: (0, 0)),              # PhiL
                pl.BlockSpec((Wb, Mw), lambda b: (0, 0)),              # PhiR^T
                pl.BlockSpec((Hb, Mh), lambda b: (0, 0)),              # pinv(PhiL)
                pl.BlockSpec((Mw, Wb), lambda b: (0, 0)),              # pinv(PhiR)^T
                pl.BlockSpec((C, Hb, Mh), lambda b: (0, 0, 0)),        # wl
                pl.BlockSpec((C, Mw, Wb), lambda b: (0, 0, 0)),        # wr^T
                pl.BlockSpec(memory_space=pltpu.MemorySpace.SMEM),     # 1x1 conv w
            ],
            out_specs=[
                pl.BlockSpec((1, C, Mh, Mw), lambda b: (b, 0, 0, 0)),
                pl.BlockSpec((1, C, Mh, Mw), lambda b: (b, 0, 0, 0)),
                pl.BlockSpec((1, n_out, Hb, Wb), lambda b: (b, 0, 0, 0)),
            ],
        ),
        compiler_params=pltpu.CompilerParams(
            dimension_semantics=("parallel",)),
        cost_estimate=pl.CostEstimate(
            flops=flops, transcendentals=0, bytes_accessed=bytes_accessed),
    )(*args)


# ---------------------------------------------------------------------------
# Mosaic plumbing (pure layout ops) + forward glue in plain JAX
# ---------------------------------------------------------------------------

def rgb_to_bayer(x):
    # RGGB: (B, 3, H, W) -> (B, 4, H/2, W/2)
    B, _, H, W = x.shape
    x4 = x.reshape(B, 3, H // 2, 2, W // 2, 2)
    r = x4[:, 0, :, 0, :, 0]
    gr = x4[:, 1, :, 0, :, 1]
    gb = x4[:, 1, :, 1, :, 0]
    b = x4[:, 2, :, 1, :, 1]
    return jnp.stack([r, gr, gb, b], axis=1)


def bayer_to_raw(m):
    # (B, 4, Mh, Mw) with channels [R(0,0), Gr(0,1), Gb(1,0), B(1,1)]
    # -> raw mosaic (B, 1, 2Mh, 2Mw)   (reshape/transpose only)
    B, _, Mh, Mw = m.shape
    m4 = m.reshape(B, 2, 2, Mh, Mw)                      # (B, di, dj, Mh, Mw)
    raw = jnp.transpose(m4, (0, 3, 1, 4, 2))             # (B, Mh, di, Mw, dj)
    return raw.reshape(B, 1, 2 * Mh, 2 * Mw)


@functools.partial(jax.jit, static_argnames=("sigma",))
def bsr_forward(x, params, noise_key, sigma):
    bayer = rgb_to_bayer(x)                                            # (B,4,Hb,Wb)
    B = bayer.shape[0]
    Mh, Mw = params["phi_l"].shape[0], params["phi_rT"].shape[1]
    # AddNoise: iid Gaussian, generated directly in Bayer layout (equivalent to
    # adding it in the raw mosaic and re-Bayering, since the mosaic is a permutation).
    noise = sigma * jax.random.normal(noise_key, (B, 4, Mh, Mw), jnp.float32)
    meas, noisy, out = bsr_fused(
        bayer, noise, params["phi_l"], params["phi_rT"],
        params["pinv_l"], params["pinv_rT"],
        params["wl"], params["wrT"], params["w_conv"])
    x_sim = bayer_to_raw(meas)                                         # (B,1,2Mh,2Mw)
    x_noise = bayer_to_raw(noisy)
    return out, x_noise, x_sim


# ---------------------------------------------------------------------------
# Deterministic parameter construction + run
# ---------------------------------------------------------------------------

def make_params(key, Hb, Wb, Mh, Mw, mid_channels):
    ks = jax.random.split(key, 8)
    phi_l = 0.1 * jax.random.normal(ks[0], (Mh, Hb), jnp.float32)
    phi_r = 0.1 * jax.random.normal(ks[1], (Mw, Wb), jnp.float32)
    phi_l_pinv = jnp.linalg.pinv(phi_l)                                # (Hb, Mh)
    phi_r_pinv = jnp.linalg.pinv(phi_r)                                # (Wb, Mw)

    # KronConv: rank-`mid_channels` factorized per-channel separable weights
    ul = 0.1 * jax.random.normal(ks[2], (4, Hb, mid_channels), jnp.float32)
    vl = 0.1 * jax.random.normal(ks[3], (4, mid_channels, Mh), jnp.float32)
    ur = 0.1 * jax.random.normal(ks[4], (4, Wb, mid_channels), jnp.float32)
    vr = 0.1 * jax.random.normal(ks[5], (4, mid_channels, Mw), jnp.float32)
    wl = jnp.einsum("chm,cmk->chk", ul, vl)                            # (4, Hb, Mh)
    wr = jnp.einsum("cwm,cmk->cwk", ur, vr)                            # (4, Wb, Mw)

    w_conv = 0.1 * jax.random.normal(ks[6], (3, 4), jnp.float32)       # 1x1 conv 4->3

    return {
        "phi_l": phi_l,                                   # (Mh, Hb)
        "phi_rT": phi_r.T,                                # (Wb, Mw)  pre-transposed
        "pinv_l": phi_l_pinv,                             # (Hb, Mh)
        "pinv_rT": phi_r_pinv.T,                          # (Mw, Wb)  pre-transposed
        "wl": wl,                                         # (4, Hb, Mh)
        "wrT": jnp.transpose(wr, (0, 2, 1)),              # (4, Mw, Wb) pre-transposed
        "w_conv": w_conv,                                 # (3, 4)
    }


if __name__ == "__main__":
    key = jax.random.PRNGKey(0)
    k_x, k_p, k_n = jax.random.split(key, 3)

    B, H, W = 2, 16, 16          # input RGB image, NCHW
    Hb, Wb = H // 2, W // 2      # Bayer resolution
    Mh, Mw = 8, 8                # simulated FlatCam measurement size
    mid_channels = 8
    sigma = 2.0 / 255.0          # args.sigma

    x = jax.random.uniform(k_x, (B, 3, H, W), jnp.float32)
    params = make_params(k_p, Hb, Wb, Mh, Mw, mid_channels)

    out, x_noise, x_sim = bsr_forward(x, params, k_n, sigma)
    jax.block_until_ready((out, x_noise, x_sim))

    assert out.shape == (B, 3, Hb, Wb)
    assert x_noise.shape == (B, 1, 2 * Mh, 2 * Mw)
    assert x_sim.shape == (B, 1, 2 * Mh, 2 * Mw)
    print("KERNEL_OK")
</pallas_src>

<mosaic_0001>
module attributes {stable_mosaic.version = 11 : i64} {
  func.func @_bsr_kernel(%arg0: i32, %arg1: memref<1x4x8x8xf32, #tpu.memory_space<vmem>>, %arg2: memref<1x4x8x8xf32, #tpu.memory_space<vmem>>, %arg3: memref<8x8xf32, #tpu.memory_space<vmem>>, %arg4: memref<8x8xf32, #tpu.memory_space<vmem>>, %arg5: memref<8x8xf32, #tpu.memory_space<vmem>>, %arg6: memref<8x8xf32, #tpu.memory_space<vmem>>, %arg7: memref<4x8x8xf32, #tpu.memory_space<vmem>>, %arg8: memref<4x8x8xf32, #tpu.memory_space<vmem>>, %arg9: memref<3x4xf32, #tpu.memory_space<smem>>, %arg10: memref<1x4x8x8xf32, #tpu.memory_space<vmem>>, %arg11: memref<1x4x8x8xf32, #tpu.memory_space<vmem>>, %arg12: memref<1x3x8x8xf32, #tpu.memory_space<vmem>>) attributes {dimension_semantics = [#tpu.dimension_semantics<parallel>], iteration_bounds = array<i64: 2>, scalar_prefetch = 0 : i64, scratch_operands = 0 : i64, tpu.core_type = #tpu.core_type<tc>, window_params = [{transform_indices = @transform_0, window_bounds = array<i64: 1, 4, 8, 8>}, {transform_indices = @transform_1, window_bounds = array<i64: 1, 4, 8, 8>}, {pipeline_mode = #tpu.pipeline_mode<synchronous>, transform_indices = @transform_2, window_bounds = array<i64: 8, 8>}, {pipeline_mode = #tpu.pipeline_mode<synchronous>, transform_indices = @transform_3, window_bounds = array<i64: 8, 8>}, {pipeline_mode = #tpu.pipeline_mode<synchronous>, transform_indices = @transform_4, window_bounds = array<i64: 8, 8>}, {pipeline_mode = #tpu.pipeline_mode<synchronous>, transform_indices = @transform_5, window_bounds = array<i64: 8, 8>}, {pipeline_mode = #tpu.pipeline_mode<synchronous>, transform_indices = @transform_6, window_bounds = array<i64: 4, 8, 8>}, {pipeline_mode = #tpu.pipeline_mode<synchronous>, transform_indices = @transform_7, window_bounds = array<i64: 4, 8, 8>}, {transform_indices = @transform_8, window_bounds = array<i64: 3, 4>}, {transform_indices = @transform_9, window_bounds = array<i64: 1, 4, 8, 8>}, {transform_indices = @transform_10, window_bounds = array<i64: 1, 4, 8, 8>}, {transform_indices = @transform_11, window_bounds = array<i64: 1, 3, 8, 8>}]} {
    %c0 = arith.constant 0 : index
    %c0_0 = arith.constant 0 : index
    %c0_1 = arith.constant 0 : index
    %c0_2 = arith.constant 0 : index
    %0 = vector.load %arg1[%c0, %c0_0, %c0_1, %c0_2] : memref<1x4x8x8xf32, #tpu.memory_space<vmem>>, vector<1x4x8x8xf32>
    %1 = vector.shape_cast %0 : vector<1x4x8x8xf32> to vector<4x8x8xf32>
    %c0_3 = arith.constant 0 : index
    %c0_4 = arith.constant 0 : index
    %2 = vector.load %arg3[%c0_3, %c0_4] : memref<8x8xf32, #tpu.memory_space<vmem>>, vector<8x8xf32>
    %3 = vector.shape_cast %1 : vector<4x8x8xf32> to vector<32x8xf32>
    %c0_5 = arith.constant 0 : index
    %c0_6 = arith.constant 0 : index
    %4 = vector.load %arg4[%c0_5, %c0_6] : memref<8x8xf32, #tpu.memory_space<vmem>>, vector<8x8xf32>
    %cst = arith.constant dense<0.000000e+00> : vector<32x8xf32>
    %5 = tpu.matmul %3, %4, %cst {dimension_numbers = #tpu.dot_dimension_numbers<[1], [0], [0], [1], [0, 0, 1, 1], [], []>} : vector<32x8xf32>, vector<8x8xf32>, vector<32x8xf32> -> vector<32x8xf32>
    %6 = vector.extract_strided_slice %5 {offsets = [0, 0], sizes = [8, 8], strides = [1, 1]} : vector<32x8xf32> to vector<8x8xf32>
    %cst_7 = arith.constant dense<0.000000e+00> : vector<8x8xf32>
    %7 = tpu.matmul %2, %6, %cst_7 {dimension_numbers = #tpu.dot_dimension_numbers<[1], [0], [0], [1], [0, 0, 1, 1], [], []>} : vector<8x8xf32>, vector<8x8xf32>, vector<8x8xf32> -> vector<8x8xf32>
    %c0_8 = arith.constant 0 : index
    %c0_9 = arith.constant 0 : index
    %c0_10 = arith.constant 0 : index
    %c0_11 = arith.constant 0 : index
    %8 = vector.load %arg10[%c0_8, %c0_9, %c0_10, %c0_11] : memref<1x4x8x8xf32, #tpu.memory_space<vmem>>, vector<1x1x8x8xf32>
    %9 = vector.shape_cast %8 : vector<1x1x8x8xf32> to vector<8x8xf32>
    %10 = vector.shape_cast %7 : vector<8x8xf32> to vector<1x1x8x8xf32>
    tpu.vector_store %arg10[%c0_8, %c0_9, %c0_10, %c0_11], %10 {strides = array<i32>} : memref<1x4x8x8xf32, #tpu.memory_space<vmem>>, vector<1x1x8x8xf32>,
    %11 = vector.extract_strided_slice %5 {offsets = [8, 0], sizes = [8, 8], strides = [1, 1]} : vector<32x8xf32> to vector<8x8xf32>
    %cst_12 = arith.constant dense<0.000000e+00> : vector<8x8xf32>
    %12 = tpu.matmul %2, %11, %cst_12 {dimension_numbers = #tpu.dot_dimension_numbers<[1], [0], [0], [1], [0, 0, 1, 1], [], []>} : vector<8x8xf32>, vector<8x8xf32>, vector<8x8xf32> -> vector<8x8xf32>
    %c0_13 = arith.constant 0 : index
    %c1 = arith.constant 1 : index
    %c0_14 = arith.constant 0 : index
    %c0_15 = arith.constant 0 : index
    %13 = vector.load %arg10[%c0_13, %c1, %c0_14, %c0_15] : memref<1x4x8x8xf32, #tpu.memory_space<vmem>>, vector<1x1x8x8xf32>
    %14 = vector.shape_cast %13 : vector<1x1x8x8xf32> to vector<8x8xf32>
    %15 = vector.shape_cast %12 : vector<8x8xf32> to vector<1x1x8x8xf32>
    tpu.vector_store %arg10[%c0_13, %c1, %c0_14, %c0_15], %15 {strides = array<i32>} : memref<1x4x8x8xf32, #tpu.memory_space<vmem>>, vector<1x1x8x8xf32>,
    %16 = vector.extract_strided_slice %5 {offsets = [16, 0], sizes = [8, 8], strides = [1, 1]} : vector<32x8xf32> to vector<8x8xf32>
    %cst_16 = arith.constant dense<0.000000e+00> : vector<8x8xf32>
    %17 = tpu.matmul %2, %16, %cst_16 {dimension_numbers = #tpu.dot_dimension_numbers<[1], [0], [0], [1], [0, 0, 1, 1], [], []>} : vector<8x8xf32>, vector<8x8xf32>, vector<8x8xf32> -> vector<8x8xf32>
    %c0_17 = arith.constant 0 : index
    %c2 = arith.constant 2 : index
    %c0_18 = arith.constant 0 : index
    %c0_19 = arith.constant 0 : index
    %18 = vector.load %arg10[%c0_17, %c2, %c0_18, %c0_19] : memref<1x4x8x8xf32, #tpu.memory_space<vmem>>, vector<1x1x8x8xf32>
    %19 = vector.shape_cast %18 : vector<1x1x8x8xf32> to vector<8x8xf32>
    %20 = vector.shape_cast %17 : vector<8x8xf32> to vector<1x1x8x8xf32>
    tpu.vector_store %arg10[%c0_17, %c2, %c0_18, %c0_19], %20 {strides = array<i32>} : memref<1x4x8x8xf32, #tpu.memory_space<vmem>>, vector<1x1x8x8xf32>,
    %21 = vector.extract_strided_slice %5 {offsets = [24, 0], sizes = [8, 8], strides = [1, 1]} : vector<32x8xf32> to vector<8x8xf32>
    %cst_20 = arith.constant dense<0.000000e+00> : vector<8x8xf32>
    %22 = tpu.matmul %2, %21, %cst_20 {dimension_numbers = #tpu.dot_dimension_numbers<[1], [0], [0], [1], [0, 0, 1, 1], [], []>} : vector<8x8xf32>, vector<8x8xf32>, vector<8x8xf32> -> vector<8x8xf32>
    %c0_21 = arith.constant 0 : index
    %c3 = arith.constant 3 : index
    %c0_22 = arith.constant 0 : index
    %c0_23 = arith.constant 0 : index
    %23 = vector.load %arg10[%c0_21, %c3, %c0_22, %c0_23] : memref<1x4x8x8xf32, #tpu.memory_space<vmem>>, vector<1x1x8x8xf32>
    %24 = vector.shape_cast %23 : vector<1x1x8x8xf32> to vector<8x8xf32>
    %25 = vector.shape_cast %22 : vector<8x8xf32> to vector<1x1x8x8xf32>
    tpu.vector_store %arg10[%c0_21, %c3, %c0_22, %c0_23], %25 {strides = array<i32>} : memref<1x4x8x8xf32, #tpu.memory_space<vmem>>, vector<1x1x8x8xf32>,
    %c0_24 = arith.constant 0 : index
    %c0_25 = arith.constant 0 : index
    %c0_26 = arith.constant 0 : index
    %c0_27 = arith.constant 0 : index
    %26 = vector.load %arg10[%c0_24, %c0_25, %c0_26, %c0_27] : memref<1x4x8x8xf32, #tpu.memory_space<vmem>>, vector<1x4x8x8xf32>
    %27 = vector.shape_cast %26 : vector<1x4x8x8xf32> to vector<4x8x8xf32>
    %c0_28 = arith.constant 0 : index
    %c0_29 = arith.constant 0 : index
    %c0_30 = arith.constant 0 : index
    %c0_31 = arith.constant 0 : index
    %28 = vector.load %arg2[%c0_28, %c0_29, %c0_30, %c0_31] : memref<1x4x8x8xf32, #tpu.memory_space<vmem>>, vector<1x4x8x8xf32>
    %29 = vector.shape_cast %28 : vector<1x4x8x8xf32> to vector<4x8x8xf32>
    %30 = arith.addf %27, %29 : vector<4x8x8xf32>
    %c0_32 = arith.constant 0 : index
    %c0_33 = arith.constant 0 : index
    %c0_34 = arith.constant 0 : index
    %c0_35 = arith.constant 0 : index
    %31 = vector.load %arg11[%c0_32, %c0_33, %c0_34, %c0_35] : memref<1x4x8x8xf32, #tpu.memory_space<vmem>>, vector<1x4x8x8xf32>
    %32 = vector.shape_cast %31 : vector<1x4x8x8xf32> to vector<4x8x8xf32>
    %33 = vector.shape_cast %30 : vector<4x8x8xf32> to vector<1x4x8x8xf32>
    tpu.vector_store %arg11[%c0_32, %c0_33, %c0_34, %c0_35], %33 {strides = array<i32>} : memref<1x4x8x8xf32, #tpu.memory_space<vmem>>, vector<1x4x8x8xf32>,
    %c0_36 = arith.constant 0 : index
    %c0_37 = arith.constant 0 : index
    %34 = vector.load %arg5[%c0_36, %c0_37] : memref<8x8xf32, #tpu.memory_space<vmem>>, vector<8x8xf32>
    %35 = vector.shape_cast %30 : vector<4x8x8xf32> to vector<32x8xf32>
    %c0_38 = arith.constant 0 : index
    %c0_39 = arith.constant 0 : index
    %36 = vector.load %arg6[%c0_38, %c0_39] : memref<8x8xf32, #tpu.memory_space<vmem>>, vector<8x8xf32>
    %cst_40 = arith.constant dense<0.000000e+00> : vector<32x8xf32>
    %37 = tpu.matmul %35, %36, %cst_40 {dimension_numbers = #tpu.dot_dimension_numbers<[1], [0], [0], [1], [0, 0, 1, 1], [], []>} : vector<32x8xf32>, vector<8x8xf32>, vector<32x8xf32> -> vector<32x8xf32>
    %cst_41 = arith.constant 0.000000e+00 : f32
    %38 = vector.broadcast %cst_41 : f32 to vector<8x8xf32>
    %cst_42 = arith.constant 0.000000e+00 : f32
    %39 = vector.broadcast %cst_42 : f32 to vector<8x8xf32>
    %cst_43 = arith.constant 0.000000e+00 : f32
    %40 = vector.broadcast %cst_43 : f32 to vector<8x8xf32>
    %41 = vector.extract_strided_slice %30 {offsets = [0, 0, 0], sizes = [1, 8, 8], strides = [1, 1, 1]} : vector<4x8x8xf32> to vector<1x8x8xf32>
    %42 = vector.shape_cast %41 : vector<1x8x8xf32> to vector<8x8xf32>
    %c0_44 = arith.constant 0 : index
    %c0_45 = arith.constant 0 : index
    %c0_46 = arith.constant 0 : index
    %43 = vector.load %arg7[%c0_44, %c0_45, %c0_46] : memref<4x8x8xf32, #tpu.memory_space<vmem>>, vector<1x8x8xf32>
    %44 = vector.shape_cast %43 : vector<1x8x8xf32> to vector<8x8xf32>
    %cst_47 = arith.constant dense<0.000000e+00> : vector<8x8xf32>
    %45 = tpu.matmul %44, %42, %cst_47 {dimension_numbers = #tpu.dot_dimension_numbers<[1], [0], [0], [1], [0, 0, 1, 1], [], []>} : vector<8x8xf32>, vector<8x8xf32>, vector<8x8xf32> -> vector<8x8xf32>
    %c0_48 = arith.constant 0 : index
    %c0_49 = arith.constant 0 : index
    %c0_50 = arith.constant 0 : index
    %46 = vector.load %arg8[%c0_48, %c0_49, %c0_50] : memref<4x8x8xf32, #tpu.memory_space<vmem>>, vector<1x8x8xf32>
    %47 = vector.shape_cast %46 : vector<1x8x8xf32> to vector<8x8xf32>
    %cst_51 = arith.constant dense<0.000000e+00> : vector<8x8xf32>
    %48 = tpu.matmul %45, %47, %cst_51 {dimension_numbers = #tpu.dot_dimension_numbers<[1], [0], [0], [1], [0, 0, 1, 1], [], []>} : vector<8x8xf32>, vector<8x8xf32>, vector<8x8xf32> -> vector<8x8xf32>
    %cst_52 = arith.constant 0.000000e+00 : f32
    %49 = vector.broadcast %cst_52 : f32 to vector<8x8xf32>
    %50 = arith.maximumf %48, %49 : vector<8x8xf32>
    %51 = vector.extract_strided_slice %37 {offsets = [0, 0], sizes = [8, 8], strides = [1, 1]} : vector<32x8xf32> to vector<8x8xf32>
    %cst_53 = arith.constant dense<0.000000e+00> : vector<8x8xf32>
    %52 = tpu.matmul %34, %51, %cst_53 {dimension_numbers = #tpu.dot_dimension_numbers<[1], [0], [0], [1], [0, 0, 1, 1], [], []>} : vector<8x8xf32>, vector<8x8xf32>, vector<8x8xf32> -> vector<8x8xf32>
    %53 = arith.addf %50, %52 : vector<8x8xf32>
    %c0_54 = arith.constant 0 : index
    %c0_55 = arith.constant 0 : index
    %54 = memref.load %arg9[%c0_54, %c0_55] : memref<3x4xf32, #tpu.memory_space<smem>>
    %55 = vector.broadcast %54 : f32 to vector<8x8xf32>
    %56 = arith.mulf %55, %53 : vector<8x8xf32>
    %57 = arith.addf %38, %56 : vector<8x8xf32>
    %c1_56 = arith.constant 1 : index
    %c0_57 = arith.constant 0 : index
    %58 = memref.load %arg9[%c1_56, %c0_57] : memref<3x4xf32, #tpu.memory_space<smem>>
    %59 = vector.broadcast %58 : f32 to vector<8x8xf32>
    %60 = arith.mulf %59, %53 : vector<8x8xf32>
    %61 = arith.addf %39, %60 : vector<8x8xf32>
    %c2_58 = arith.constant 2 : index
    %c0_59 = arith.constant 0 : index
    %62 = memref.load %arg9[%c2_58, %c0_59] : memref<3x4xf32, #tpu.memory_space<smem>>
    %63 = vector.broadcast %62 : f32 to vector<8x8xf32>
    %64 = arith.mulf %63, %53 : vector<8x8xf32>
    %65 = arith.addf %40, %64 : vector<8x8xf32>
    %66 = vector.extract_strided_slice %30 {offsets = [1, 0, 0], sizes = [1, 8, 8], strides = [1, 1, 1]} : vector<4x8x8xf32> to vector<1x8x8xf32>
    %67 = vector.shape_cast %66 : vector<1x8x8xf32> to vector<8x8xf32>
    %c1_60 = arith.constant 1 : index
    %c0_61 = arith.constant 0 : index
    %c0_62 = arith.constant 0 : index
    %68 = vector.load %arg7[%c1_60, %c0_61, %c0_62] : memref<4x8x8xf32, #tpu.memory_space<vmem>>, vector<1x8x8xf32>
    %69 = vector.shape_cast %68 : vector<1x8x8xf32> to vector<8x8xf32>
    %cst_63 = arith.constant dense<0.000000e+00> : vector<8x8xf32>
    %70 = tpu.matmul %69, %67, %cst_63 {dimension_numbers = #tpu.dot_dimension_numbers<[1], [0], [0], [1], [0, 0, 1, 1], [], []>} : vector<8x8xf32>, vector<8x8xf32>, vector<8x8xf32> -> vector<8x8xf32>
    %c1_64 = arith.constant 1 : index
    %c0_65 = arith.constant 0 : index
    %c0_66 = arith.constant 0 : index
    %71 = vector.load %arg8[%c1_64, %c0_65, %c0_66] : memref<4x8x8xf32, #tpu.memory_space<vmem>>, vector<1x8x8xf32>
    %72 = vector.shape_cast %71 : vector<1x8x8xf32> to vector<8x8xf32>
    %cst_67 = arith.constant dense<0.000000e+00> : vector<8x8xf32>
    %73 = tpu.matmul %70, %72, %cst_67 {dimension_numbers = #tpu.dot_dimension_numbers<[1], [0], [0], [1], [0, 0, 1, 1], [], []>} : vector<8x8xf32>, vector<8x8xf32>, vector<8x8xf32> -> vector<8x8xf32>
    %cst_68 = arith.constant 0.000000e+00 : f32
    %74 = vector.broadcast %cst_68 : f32 to vector<8x8xf32>
    %75 = arith.maximumf %73, %74 : vector<8x8xf32>
    %76 = vector.extract_strided_slice %37 {offsets = [8, 0], sizes = [8, 8], strides = [1, 1]} : vector<32x8xf32> to vector<8x8xf32>
    %cst_69 = arith.constant dense<0.000000e+00> : vector<8x8xf32>
    %77 = tpu.matmul %34, %76, %cst_69 {dimension_numbers = #tpu.dot_dimension_numbers<[1], [0], [0], [1], [0, 0, 1, 1], [], []>} : vector<8x8xf32>, vector<8x8xf32>, vector<8x8xf32> -> vector<8x8xf32>
    %78 = arith.addf %75, %77 : vector<8x8xf32>
    %c0_70 = arith.constant 0 : index
    %c1_71 = arith.constant 1 : index
    %79 = memref.load %arg9[%c0_70, %c1_71] : memref<3x4xf32, #tpu.memory_space<smem>>
    %80 = vector.broadcast %79 : f32 to vector<8x8xf32>
    %81 = arith.mulf %80, %78 : vector<8x8xf32>
    %82 = arith.addf %57, %81 : vector<8x8xf32>
    %c1_72 = arith.constant 1 : index
    %c1_73 = arith.constant 1 : index
    %83 = memref.load %arg9[%c1_72, %c1_73] : memref<3x4xf32, #tpu.memory_space<smem>>
    %84 = vector.broadcast %83 : f32 to vector<8x8xf32>
    %85 = arith.mulf %84, %78 : vector<8x8xf32>
    %86 = arith.addf %61, %85 : vector<8x8xf32>
    %c2_74 = arith.constant 2 : index
    %c1_75 = arith.constant 1 : index
    %87 = memref.load %arg9[%c2_74, %c1_75] : memref<3x4xf32, #tpu.memory_space<smem>>
    %88 = vector.broadcast %87 : f32 to vector<8x8xf32>
    %89 = arith.mulf %88, %78 : vector<8x8xf32>
    %90 = arith.addf %65, %89 : vector<8x8xf32>
    %91 = vector.extract_strided_slice %30 {offsets = [2, 0, 0], sizes = [1, 8, 8], strides = [1, 1, 1]} : vector<4x8x8xf32> to vector<1x8x8xf32>
    %92 = vector.shape_cast %91 : vector<1x8x8xf32> to vector<8x8xf32>
    %c2_76 = arith.constant 2 : index
    %c0_77 = arith.constant 0 : index
    %c0_78 = arith.constant 0 : index
    %93 = vector.load %arg7[%c2_76, %c0_77, %c0_78] : memref<4x8x8xf32, #tpu.memory_space<vmem>>, vector<1x8x8xf32>
    %94 = vector.shape_cast %93 : vector<1x8x8xf32> to vector<8x8xf32>
    %cst_79 = arith.constant dense<0.000000e+00> : vector<8x8xf32>
    %95 = tpu.matmul %94, %92, %cst_79 {dimension_numbers = #tpu.dot_dimension_numbers<[1], [0], [0], [1], [0, 0, 1, 1], [], []>} : vector<8x8xf32>, vector<8x8xf32>, vector<8x8xf32> -> vector<8x8xf32>
    %c2_80 = arith.constant 2 : index
    %c0_81 = arith.constant 0 : index
    %c0_82 = arith.constant 0 : index
    %96 = vector.load %arg8[%c2_80, %c0_81, %c0_82] : memref<4x8x8xf32, #tpu.memory_space<vmem>>, vector<1x8x8xf32>
    %97 = vector.shape_cast %96 : vector<1x8x8xf32> to vector<8x8xf32>
    %cst_83 = arith.constant dense<0.000000e+00> : vector<8x8xf32>
    %98 = tpu.matmul %95, %97, %cst_83 {dimension_numbers = #tpu.dot_dimension_numbers<[1], [0], [0], [1], [0, 0, 1, 1], [], []>} : vector<8x8xf32>, vector<8x8xf32>, vector<8x8xf32> -> vector<8x8xf32>
    %cst_84 = arith.constant 0.000000e+00 : f32
    %99 = vector.broadcast %cst_84 : f32 to vector<8x8xf32>
    %100 = arith.maximumf %98, %99 : vector<8x8xf32>
    %101 = vector.extract_strided_slice %37 {offsets = [16, 0], sizes = [8, 8], strides = [1, 1]} : vector<32x8xf32> to vector<8x8xf32>
    %cst_85 = arith.constant dense<0.000000e+00> : vector<8x8xf32>
    %102 = tpu.matmul %34, %101, %cst_85 {dimension_numbers = #tpu.dot_dimension_numbers<[1], [0], [0], [1], [0, 0, 1, 1], [], []>} : vector<8x8xf32>, vector<8x8xf32>, vector<8x8xf32> -> vector<8x8xf32>
    %103 = arith.addf %100, %102 : vector<8x8xf32>
    %c0_86 = arith.constant 0 : index
    %c2_87 = arith.constant 2 : index
    %104 = memref.load %arg9[%c0_86, %c2_87] : memref<3x4xf32, #tpu.memory_space<smem>>
    %105 = vector.broadcast %104 : f32 to vector<8x8xf32>
    %106 = arith.mulf %105, %103 : vector<8x8xf32>
    %107 = arith.addf %82, %106 : vector<8x8xf32>
    %c1_88 = arith.constant 1 : index
    %c2_89 = arith.constant 2 : index
    %108 = memref.load %arg9[%c1_88, %c2_89] : memref<3x4xf32, #tpu.memory_space<smem>>
    %109 = vector.broadcast %108 : f32 to vector<8x8xf32>
    %110 = arith.mulf %109, %103 : vector<8x8xf32>
    %111 = arith.addf %86, %110 : vector<8x8xf32>
    %c2_90 = arith.constant 2 : index
    %c2_91 = arith.constant 2 : index
    %112 = memref.load %arg9[%c2_90, %c2_91] : memref<3x4xf32, #tpu.memory_space<smem>>
    %113 = vector.broadcast %112 : f32 to vector<8x8xf32>
    %114 = arith.mulf %113, %103 : vector<8x8xf32>
    %115 = arith.addf %90, %114 : vector<8x8xf32>
    %116 = vector.extract_strided_slice %30 {offsets = [3, 0, 0], sizes = [1, 8, 8], strides = [1, 1, 1]} : vector<4x8x8xf32> to vector<1x8x8xf32>
    %117 = vector.shape_cast %116 : vector<1x8x8xf32> to vector<8x8xf32>
    %c3_92 = arith.constant 3 : index
    %c0_93 = arith.constant 0 : index
    %c0_94 = arith.constant 0 : index
    %118 = vector.load %arg7[%c3_92, %c0_93, %c0_94] : memref<4x8x8xf32, #tpu.memory_space<vmem>>, vector<1x8x8xf32>
    %119 = vector.shape_cast %118 : vector<1x8x8xf32> to vector<8x8xf32>
    %cst_95 = arith.constant dense<0.000000e+00> : vector<8x8xf32>
    %120 = tpu.matmul %119, %117, %cst_95 {dimension_numbers = #tpu.dot_dimension_numbers<[1], [0], [0], [1], [0, 0, 1, 1], [], []>} : vector<8x8xf32>, vector<8x8xf32>, vector<8x8xf32> -> vector<8x8xf32>
    %c3_96 = arith.constant 3 : index
    %c0_97 = arith.constant 0 : index
    %c0_98 = arith.constant 0 : index
    %121 = vector.load %arg8[%c3_96, %c0_97, %c0_98] : memref<4x8x8xf32, #tpu.memory_space<vmem>>, vector<1x8x8xf32>
    %122 = vector.shape_cast %121 : vector<1x8x8xf32> to vector<8x8xf32>
    %cst_99 = arith.constant dense<0.000000e+00> : vector<8x8xf32>
    %123 = tpu.matmul %120, %122, %cst_99 {dimension_numbers = #tpu.dot_dimension_numbers<[1], [0], [0], [1], [0, 0, 1, 1], [], []>} : vector<8x8xf32>, vector<8x8xf32>, vector<8x8xf32> -> vector<8x8xf32>
    %cst_100 = arith.constant 0.000000e+00 : f32
    %124 = vector.broadcast %cst_100 : f32 to vector<8x8xf32>
    %125 = arith.maximumf %123, %124 : vector<8x8xf32>
    %126 = vector.extract_strided_slice %37 {offsets = [24, 0], sizes = [8, 8], strides = [1, 1]} : vector<32x8xf32> to vector<8x8xf32>
    %cst_101 = arith.constant dense<0.000000e+00> : vector<8x8xf32>
    %127 = tpu.matmul %34, %126, %cst_101 {dimension_numbers = #tpu.dot_dimension_numbers<[1], [0], [0], [1], [0, 0, 1, 1], [], []>} : vector<8x8xf32>, vector<8x8xf32>, vector<8x8xf32> -> vector<8x8xf32>
    %128 = arith.addf %125, %127 : vector<8x8xf32>
    %c0_102 = arith.constant 0 : index
    %c3_103 = arith.constant 3 : index
    %129 = memref.load %arg9[%c0_102, %c3_103] : memref<3x4xf32, #tpu.memory_space<smem>>
    %130 = vector.broadcast %129 : f32 to vector<8x8xf32>
    %131 = arith.mulf %130, %128 : vector<8x8xf32>
    %132 = arith.addf %107, %131 : vector<8x8xf32>
    %c1_104 = arith.constant 1 : index
    %c3_105 = arith.constant 3 : index
    %133 = memref.load %arg9[%c1_104, %c3_105] : memref<3x4xf32, #tpu.memory_space<smem>>
    %134 = vector.broadcast %133 : f32 to vector<8x8xf32>
    %135 = arith.mulf %134, %128 : vector<8x8xf32>
    %136 = arith.addf %111, %135 : vector<8x8xf32>
    %c2_106 = arith.constant 2 : index
    %c3_107 = arith.constant 3 : index
    %137 = memref.load %arg9[%c2_106, %c3_107] : memref<3x4xf32, #tpu.memory_space<smem>>
    %138 = vector.broadcast %137 : f32 to vector<8x8xf32>
    %139 = arith.mulf %138, %128 : vector<8x8xf32>
    %140 = arith.addf %115, %139 : vector<8x8xf32>
    %c0_108 = arith.constant 0 : index
    %c0_109 = arith.constant 0 : index
    %c0_110 = arith.constant 0 : index
    %c0_111 = arith.constant 0 : index
    %141 = vector.load %arg12[%c0_108, %c0_109, %c0_110, %c0_111] : memref<1x3x8x8xf32, #tpu.memory_space<vmem>>, vector<1x1x8x8xf32>
    %142 = vector.shape_cast %141 : vector<1x1x8x8xf32> to vector<8x8xf32>
    %143 = vector.shape_cast %132 : vector<8x8xf32> to vector<1x1x8x8xf32>
    tpu.vector_store %arg12[%c0_108, %c0_109, %c0_110, %c0_111], %143 {strides = array<i32>} : memref<1x3x8x8xf32, #tpu.memory_space<vmem>>, vector<1x1x8x8xf32>,
    %c0_112 = arith.constant 0 : index
    %c1_113 = arith.constant 1 : index
    %c0_114 = arith.constant 0 : index
    %c0_115 = arith.constant 0 : index
    %144 = vector.load %arg12[%c0_112, %c1_113, %c0_114, %c0_115] : memref<1x3x8x8xf32, #tpu.memory_space<vmem>>, vector<1x1x8x8xf32>
    %145 = vector.shape_cast %144 : vector<1x1x8x8xf32> to vector<8x8xf32>
    %146 = vector.shape_cast %136 : vector<8x8xf32> to vector<1x1x8x8xf32>
    tpu.vector_store %arg12[%c0_112, %c1_113, %c0_114, %c0_115], %146 {strides = array<i32>} : memref<1x3x8x8xf32, #tpu.memory_space<vmem>>, vector<1x1x8x8xf32>,
    %c0_116 = arith.constant 0 : index
    %c2_117 = arith.constant 2 : index
    %c0_118 = arith.constant 0 : index
    %c0_119 = arith.constant 0 : index
    %147 = vector.load %arg12[%c0_116, %c2_117, %c0_118, %c0_119] : memref<1x3x8x8xf32, #tpu.memory_space<vmem>>, vector<1x1x8x8xf32>
    %148 = vector.shape_cast %147 : vector<1x1x8x8xf32> to vector<8x8xf32>
    %149 = vector.shape_cast %140 : vector<8x8xf32> to vector<1x1x8x8xf32>
    tpu.vector_store %arg12[%c0_116, %c2_117, %c0_118, %c0_119], %149 {strides = array<i32>} : memref<1x3x8x8xf32, #tpu.memory_space<vmem>>, vector<1x1x8x8xf32>,
    return
  }
  func.func @transform_0(%arg0: i32) -> (i32, i32, i32, i32) {
    %c0_i32 = arith.constant 0 : i32
    %c0_i32_0 = arith.constant 0 : i32
    %c0_i32_1 = arith.constant 0 : i32
    %c0_i32_2 = arith.constant 0 : i32
    return %arg0, %c0_i32, %c0_i32_0, %c0_i32_1 : i32, i32, i32, i32
  }
  func.func @transform_1(%arg0: i32) -> (i32, i32, i32, i32) {
    %c0_i32 = arith.constant 0 : i32
    %c0_i32_0 = arith.constant 0 : i32
    %c0_i32_1 = arith.constant 0 : i32
    %c0_i32_2 = arith.constant 0 : i32
    return %arg0, %c0_i32, %c0_i32_0, %c0_i32_1 : i32, i32, i32, i32
  }
  func.func @transform_2(%arg0: i32) -> (i32, i32) {
    %c0_i32 = arith.constant 0 : i32
    %c0_i32_0 = arith.constant 0 : i32
    %c0_i32_1 = arith.constant 0 : i32
    return %c0_i32, %c0_i32_0 : i32, i32
  }
  func.func @transform_3(%arg0: i32) -> (i32, i32) {
    %c0_i32 = arith.constant 0 : i32
    %c0_i32_0 = arith.constant 0 : i32
    %c0_i32_1 = arith.constant 0 : i32
    return %c0_i32, %c0_i32_0 : i32, i32
  }
  func.func @transform_4(%arg0: i32) -> (i32, i32) {
    %c0_i32 = arith.constant 0 : i32
    %c0_i32_0 = arith.constant 0 : i32
    %c0_i32_1 = arith.constant 0 : i32
    return %c0_i32, %c0_i32_0 : i32, i32
  }
  func.func @transform_5(%arg0: i32) -> (i32, i32) {
    %c0_i32 = arith.constant 0 : i32
    %c0_i32_0 = arith.constant 0 : i32
    %c0_i32_1 = arith.constant 0 : i32
    return %c0_i32, %c0_i32_0 : i32, i32
  }
  func.func @transform_6(%arg0: i32) -> (i32, i32, i32) {
    %c0_i32 = arith.constant 0 : i32
    %c0_i32_0 = arith.constant 0 : i32
    %c0_i32_1 = arith.constant 0 : i32
    %c0_i32_2 = arith.constant 0 : i32
    return %c0_i32, %c0_i32_0, %c0_i32_1 : i32, i32, i32
  }
  func.func @transform_7(%arg0: i32) -> (i32, i32, i32) {
    %c0_i32 = arith.constant 0 : i32
    %c0_i32_0 = arith.constant 0 : i32
    %c0_i32_1 = arith.constant 0 : i32
    %c0_i32_2 = arith.constant 0 : i32
    return %c0_i32, %c0_i32_0, %c0_i32_1 : i32, i32, i32
  }
  func.func @transform_8(%arg0: i32) -> (i32, i32) {
    %c0_i32 = arith.constant 0 : i32
    %c0_i32_0 = arith.constant 0 : i32
    %c0_i32_1 = arith.constant 0 : i32
    return %c0_i32, %c0_i32_0 : i32, i32
  }
  func.func @transform_9(%arg0: i32) -> (i32, i32, i32, i32) {
    %c0_i32 = arith.constant 0 : i32
    %c0_i32_0 = arith.constant 0 : i32
    %c0_i32_1 = arith.constant 0 : i32
    %c0_i32_2 = arith.constant 0 : i32
    return %arg0, %c0_i32, %c0_i32_0, %c0_i32_1 : i32, i32, i32, i32
  }
  func.func @transform_10(%arg0: i32) -> (i32, i32, i32, i32) {
    %c0_i32 = arith.constant 0 : i32
    %c0_i32_0 = arith.constant 0 : i32
    %c0_i32_1 = arith.constant 0 : i32
    %c0_i32_2 = arith.constant 0 : i32
    return %arg0, %c0_i32, %c0_i32_0, %c0_i32_1 : i32, i32, i32, i32
  }
  func.func @transform_11(%arg0: i32) -> (i32, i32, i32, i32) {
    %c0_i32 = arith.constant 0 : i32
    %c0_i32_0 = arith.constant 0 : i32
    %c0_i32_1 = arith.constant 0 : i32
    %c0_i32_2 = arith.constant 0 : i32
    return %arg0, %c0_i32, %c0_i32_0, %c0_i32_1 : i32, i32, i32, i32
  }
}

</mosaic_0001>

<llo_original>
// kernel: bsr_forward.1
$region0: #{bsr_forward.1}
  #allocation0 [shape = 'u32[]', space=smem, size = 0x4, offset = 0x4, fixed_abs, tag = 'smem constant byte address 0x4 - core index']
  #allocation1 [shape = 'u32[144,128]{1,0:T(1,128)}', space=vmem, size = 0x12000, scoped, tag = 'internal scratch']
  %s0 = inlined_call_operand.vmem [shape: f32[2,4,8,8], index: 0, kind: input, shape index: {}]
  %s1 = inlined_call_operand.vmem [shape: f32[2,4,8,8], index: 1, kind: input, shape index: {}]
  %s2 = inlined_call_operand.vmem [shape: f32[8,8], index: 2, kind: input, shape index: {}]
  %s3 = inlined_call_operand.vmem [shape: f32[8,8], index: 3, kind: input, shape index: {}]
  %s4 = inlined_call_operand.vmem [shape: f32[8,8], index: 4, kind: input, shape index: {}]
  %s5 = inlined_call_operand.vmem [shape: f32[8,8], index: 5, kind: input, shape index: {}]
  %s6 = inlined_call_operand.vmem [shape: f32[4,8,8], index: 6, kind: input, shape index: {}]
  %s7 = inlined_call_operand.vmem [shape: f32[4,8,8], index: 7, kind: input, shape index: {}]
  %s8 = inlined_call_operand.vmem [shape: f32[3,4], index: 8, kind: input, shape index: {}]
  %s9 = inlined_call_operand.vmem [shape: f32[2,4,8,8], index: 9, kind: output, shape index: {0}]
  %s10 = inlined_call_operand.vmem [shape: f32[2,4,8,8], index: 10, kind: output, shape index: {1}]
  %s11 = inlined_call_operand.hbm [shape: f32[2,3,8,8], index: 11, kind: output, shape index: {2}]
  %12 = xla_tuple %s9, %s10, %s11
  %s13 = sld [smem:[#allocation0]]
  $region89: #{bsr_forward.1} parent=0
    _
  %s15 = ssub.s32 1, %s13
  %s16 = scalar_select 0, %s15, %s13
  $region1: #{bsr_forward.1} parent=0
    #allocation2 [shape = 'u8[2048]{0}', space=smem, size = 0x800, scoped, tag = 'input window, operand 8, single buffered']
    #allocation3 [shape = 's32[2]{0}', space=sflag, size = 0x8, scoped, tag = 'scoped memory for bsr_forward.1']
    #allocation4 [shape = 's32[2]{0}', space=sflag, size = 0x8, scoped, tag = 'scoped memory for bsr_forward.1']
    #allocation5 [shape = 'u8[24576]{0}', space=vmem, size = 0x6000, scoped, tag = 'output window, operand 2']
    %17 = vsyncpa [#allocation4], 0
    %18 = vsyncpa [#allocation3], 0
    %s19 = scalar_lea.sflag [#allocation3], 1
    %20 = vsyncpa %s19, 0
    loop: start=0, step=1, limit=4
    $region2: #{bsr_forward.1} parent=1 // loop_pre_header
      _
    $region3: #{bsr_forward.1} parent=1 // loop_header
      %s22 = sphi 0, %s26
      %p23 = scmp.ge.s32.totalorder %s22, 4
      %s32 = sphi 0, %s34
      %s35 = sphi 0, %s32
      %s36 = sphi 0, %s35
      %s52 = sphi 0, %s36
      %s58 = sphi 0, %s60
      %s61 = sphi 0, %s58
      %s62 = sphi 0, %s61
      %s78 = sphi 0, %s62
      %s82 = sphi 0, %s82
      %s84 = sphi 0, %s82
      %s85 = sphi 0, %s84
      %s99 = sphi 0, %s85
      %s103 = sphi 0, %s103
      %s105 = sphi 0, %s103
      %s106 = sphi 0, %s105
      %s120 = sphi 0, %s106
      %s124 = sphi 0, %s124
      %s126 = sphi 0, %s124
      %s127 = sphi 0, %s126
      %s141 = sphi 0, %s127
      %s145 = sphi 0, %s145
      %s147 = sphi 0, %s145
      %s148 = sphi 0, %s147
      %s162 = sphi 0, %s148
      %s166 = sphi 0, %s166
      %s168 = sphi 0, %s166
      %s169 = sphi 0, %s168
      %s183 = sphi 0, %s169
      %s187 = sphi 0, %s187
      %s189 = sphi 0, %s187
      %s190 = sphi 0, %s189
      %s204 = sphi 0, %s190
      %s208 = sphi 0, %s208
      %s210 = sphi 0, %s208
      %s211 = sphi 0, %s210
      %s225 = sphi 0, %s211
      %s231 = sphi 0, %s233
      %s234 = sphi 0, %s231
      %s235 = sphi 0, %s234
      %s251 = sphi 0, %s235
      %s257 = sphi 0, %s259
      %s260 = sphi 0, %s257
      %s261 = sphi 0, %s260
      %s277 = sphi 0, %s261
      %s283 = sphi 0, %s285
      %s286 = sphi 0, %s283
      %s287 = sphi 0, %s286
      %s303 = sphi 0, %s287
    $region4: #{bsr_forward.1} parent=1 // loop_header_branch
      %25 = sbr.rel (%p23) target = $region8
    $region5: #{bsr_forward.1} parent=1 // loop_body
      %s27 = ssub.s32 %s22, 1
      %s28 = ssub.s32 %s22, 2
      %s29 = sadd.s32 %s22, 1
      %s30 = ssub.s32 %s22, %s29
      %p31 = scmp.eq.s32.totalorder %s30, 0
      %s33 = sadd.s32 %s32, 1
      %s34 = scalar_select %p31, %s32, %s33
      %p37 = pneg %p31
      %p38 = scmp.eq.s32.totalorder %s22, 1
      %p39 = por %p37, %p38
      %p40 = scmp.ne.s32.totalorder %s32, %s35
      %p41 = scmp.eq.s32.totalorder %s22, 0
      %p42 = por %p40, %p41
      %p43 = scmp.ne.s32.totalorder %s32, %s35
      %p44 = scmp.eq.s32.totalorder %s27, 1
      %p45 = por %p43, %p44
      %p46 = scmp.ne.s32.totalorder %s35, %s36
      %p47 = scmp.eq.s32.totalorder %s27, 0
      %p48 = por %p46, %p47
      %p49 = scmp.ne.s32.totalorder %s35, %s36
      %p50 = scmp.eq.s32.totalorder %s28, 1
      %p51 = por %p49, %p50
      %p53 = scmp.ne.s32.totalorder %s36, %s52
      %p54 = scmp.eq.s32.totalorder %s28, 0
      %p55 = por %p53, %p54
      %s56 = ssub.s32 %s22, %s29
      %p57 = scmp.eq.s32.totalorder %s56, 0
      %s59 = sadd.s32 %s58, 1
      %s60 = scalar_select %p57, %s58, %s59
      %p63 = pneg %p57
      %p64 = scmp.eq.s32.totalorder %s22, 1
      %p65 = por %p63, %p64
      %p66 = scmp.ne.s32.totalorder %s58, %s61
      %p67 = scmp.eq.s32.totalorder %s22, 0
      %p68 = por %p66, %p67
      %p69 = scmp.ne.s32.totalorder %s58, %s61
      %p70 = scmp.eq.s32.totalorder %s27, 1
      %p71 = por %p69, %p70
      %p72 = scmp.ne.s32.totalorder %s61, %s62
      %p73 = scmp.eq.s32.totalorder %s27, 0
      %p74 = por %p72, %p73
      %p75 = scmp.ne.s32.totalorder %s61, %s62
      %p76 = scmp.eq.s32.totalorder %s28, 1
      %p77 = por %p75, %p76
      %p79 = scmp.ne.s32.totalorder %s62, %s78
      %p80 = scmp.eq.s32.totalorder %s28, 0
      %p81 = por %p79, %p80
      %s83 = sadd.s32 %s82, 1
      %p86 = scmp.eq.s32.totalorder %s22, 1
      %p87 = scmp.ne.s32.totalorder %s82, %s84
      %p88 = scmp.eq.s32.totalorder %s22, 0
      %p89 = por %p87, %p88
      %p90 = scmp.ne.s32.totalorder %s82, %s84
      %p91 = scmp.eq.s32.totalorder %s27, 1
      %p92 = por %p90, %p91
      %p93 = scmp.ne.s32.totalorder %s84, %s85
      %p94 = scmp.eq.s32.totalorder %s27, 0
      %p95 = por %p93, %p94
      %p96 = scmp.ne.s32.totalorder %s84, %s85
      %p97 = scmp.eq.s32.totalorder %s28, 1
      %p98 = por %p96, %p97
      %p100 = scmp.ne.s32.totalorder %s85, %s99
      %p101 = scmp.eq.s32.totalorder %s28, 0
      %p102 = por %p100, %p101
      %s104 = sadd.s32 %s103, 1
      %p107 = scmp.eq.s32.totalorder %s22, 1
      %p108 = scmp.ne.s32.totalorder %s103, %s105
      %p109 = scmp.eq.s32.totalorder %s22, 0
      %p110 = por %p108, %p109
      %p111 = scmp.ne.s32.totalorder %s103, %s105
      %p112 = scmp.eq.s32.totalorder %s27, 1
      %p113 = por %p111, %p112
      %p114 = scmp.ne.s32.totalorder %s105, %s106
      %p115 = scmp.eq.s32.totalorder %s27, 0
      %p116 = por %p114, %p115
      %p117 = scmp.ne.s32.totalorder %s105, %s106
      %p118 = scmp.eq.s32.totalorder %s28, 1
      %p119 = por %p117, %p118
      %p121 = scmp.ne.s32.totalorder %s106, %s120
      %p122 = scmp.eq.s32.totalorder %s28, 0
      %p123 = por %p121, %p122
      %s125 = sadd.s32 %s124, 1
      %p128 = scmp.eq.s32.totalorder %s22, 1
      %p129 = scmp.ne.s32.totalorder %s124, %s126
      %p130 = scmp.eq.s32.totalorder %s22, 0
      %p131 = por %p129, %p130
      %p132 = scmp.ne.s32.totalorder %s124, %s126
      %p133 = scmp.eq.s32.totalorder %s27, 1
      %p134 = por %p132, %p133
      %p135 = scmp.ne.s32.totalorder %s126, %s127
      %p136 = scmp.eq.s32.totalorder %s27, 0
      %p137 = por %p135, %p136
      %p138 = scmp.ne.s32.totalorder %s126, %s127
      %p139 = scmp.eq.s32.totalorder %s28, 1
      %p140 = por %p138, %p139
      %p142 = scmp.ne.s32.totalorder %s127, %s141
      %p143 = scmp.eq.s32.totalorder %s28, 0
      %p144 = por %p142, %p143
      %s146 = sadd.s32 %s145, 1
      %p149 = scmp.eq.s32.totalorder %s22, 1
      %p150 = scmp.ne.s32.totalorder %s145, %s147
      %p151 = scmp.eq.s32.totalorder %s22, 0
      %p152 = por %p150, %p151
      %p153 = scmp.ne.s32.totalorder %s145, %s147
      %p154 = scmp.eq.s32.totalorder %s27, 1
      %p155 = por %p153, %p154
      %p156 = scmp.ne.s32.totalorder %s147, %s148
      %p157 = scmp.eq.s32.totalorder %s27, 0
      %p158 = por %p156, %p157
      %p159 = scmp.ne.s32.totalorder %s147, %s148
      %p160 = scmp.eq.s32.totalorder %s28, 1
      %p161 = por %p159, %p160
      %p163 = scmp.ne.s32.totalorder %s148, %s162
      %p164 = scmp.eq.s32.totalorder %s28, 0
      %p165 = por %p163, %p164
      %s167 = sadd.s32 %s166, 1
      %p170 = scmp.eq.s32.totalorder %s22, 1
      %p171 = scmp.ne.s32.totalorder %s166, %s168
      %p172 = scmp.eq.s32.totalorder %s22, 0
      %p173 = por %p171, %p172
      %p174 = scmp.ne.s32.totalorder %s166, %s168
      %p175 = scmp.eq.s32.totalorder %s27, 1
      %p176 = por %p174, %p175
      %p177 = scmp.ne.s32.totalorder %s168, %s169
      %p178 = scmp.eq.s32.totalorder %s27, 0
      %p179 = por %p177, %p178
      %p180 = scmp.ne.s32.totalorder %s168, %s169
      %p181 = scmp.eq.s32.totalorder %s28, 1
      %p182 = por %p180, %p181
      %p184 = scmp.ne.s32.totalorder %s169, %s183
      %p185 = scmp.eq.s32.totalorder %s28, 0
      %p186 = por %p184, %p185
      %s188 = sadd.s32 %s187, 1
      %p191 = scmp.eq.s32.totalorder %s22, 1
      %p192 = scmp.ne.s32.totalorder %s187, %s189
      %p193 = scmp.eq.s32.totalorder %s22, 0
      %p194 = por %p192, %p193
      %p195 = scmp.ne.s32.totalorder %s187, %s189
      %p196 = scmp.eq.s32.totalorder %s27, 1
      %p197 = por %p195, %p196
      %p198 = scmp.ne.s32.totalorder %s189, %s190
      %p199 = scmp.eq.s32.totalorder %s27, 0
      %p200 = por %p198, %p199
      %p201 = scmp.ne.s32.totalorder %s189, %s190
      %p202 = scmp.eq.s32.totalorder %s28, 1
      %p203 = por %p201, %p202
      %p205 = scmp.ne.s32.totalorder %s190, %s204
      %p206 = scmp.eq.s32.totalorder %s28, 0
      %p207 = por %p205, %p206
      %s209 = sadd.s32 %s208, 1
      %p212 = scmp.eq.s32.totalorder %s22, 1
      %p213 = scmp.ne.s32.totalorder %s208, %s210
      %p214 = scmp.eq.s32.totalorder %s22, 0
      %p215 = por %p213, %p214
      %p216 = scmp.ne.s32.totalorder %s208, %s210
      %p217 = scmp.eq.s32.totalorder %s27, 1
      %p218 = por %p216, %p217
      %p219 = scmp.ne.s32.totalorder %s210, %s211
      %p220 = scmp.eq.s32.totalorder %s27, 0
      %p221 = por %p219, %p220
      %p222 = scmp.ne.s32.totalorder %s210, %s211
      %p223 = scmp.eq.s32.totalorder %s28, 1
      %p224 = por %p222, %p223
      %p226 = scmp.ne.s32.totalorder %s211, %s225
      %p227 = scmp.eq.s32.totalorder %s28, 0
      %p228 = por %p226, %p227
      %s229 = ssub.s32 %s22, %s29
      %p230 = scmp.eq.s32.totalorder %s229, 0
      %s232 = sadd.s32 %s231, 1
      %s233 = scalar_select %p230, %s231, %s232
      %p236 = pneg %p230
      %p237 = scmp.eq.s32.totalorder %s22, 1
      %p238 = por %p236, %p237
      %p239 = scmp.ne.s32.totalorder %s231, %s234
      %p240 = scmp.eq.s32.totalorder %s22, 0
      %p241 = por %p239, %p240
      %p242 = scmp.ne.s32.totalorder %s231, %s234
      %p243 = scmp.eq.s32.totalorder %s27, 1
      %p244 = por %p242, %p243
      %p245 = scmp.ne.s32.totalorder %s234, %s235
      %p246 = scmp.eq.s32.totalorder %s27, 0
      %p247 = por %p245, %p246
      %p248 = scmp.ne.s32.totalorder %s234, %s235
      %p249 = scmp.eq.s32.totalorder %s28, 1
      %p250 = por %p248, %p249
      %p252 = scmp.ne.s32.totalorder %s235, %s251
      %p253 = scmp.eq.s32.totalorder %s28, 0
      %p254 = por %p252, %p253
      %s255 = ssub.s32 %s22, %s29
      %p256 = scmp.eq.s32.totalorder %s255, 0
      %s258 = sadd.s32 %s257, 1
      %s259 = scalar_select %p256, %s257, %s258
      %p262 = pneg %p256
      %p263 = scmp.eq.s32.totalorder %s22, 1
      %p264 = por %p262, %p263
      %p265 = scmp.ne.s32.totalorder %s257, %s260
      %p266 = scmp.eq.s32.totalorder %s22, 0
      %p267 = por %p265, %p266
      %p268 = scmp.ne.s32.totalorder %s257, %s260
      %p269 = scmp.eq.s32.totalorder %s27, 1
      %p270 = por %p268, %p269
      %p271 = scmp.ne.s32.totalorder %s260, %s261
      %p272 = scmp.eq.s32.totalorder %s27, 0
      %p273 = por %p271, %p272
      %p274 = scmp.ne.s32.totalorder %s260, %s261
      %p275 = scmp.eq.s32.totalorder %s28, 1
      %p276 = por %p274, %p275
      %p278 = scmp.ne.s32.totalorder %s261, %s277
      %p279 = scmp.eq.s32.totalorder %s28, 0
      %p280 = por %p278, %p279
      %s281 = ssub.s32 %s22, %s29
      %p282 = scmp.eq.s32.totalorder %s281, 0
      %s284 = sadd.s32 %s283, 1
      %s285 = scalar_select %p282, %s283, %s284
      %p288 = pneg %p282
      %p289 = scmp.eq.s32.totalorder %s22, 1
      %p290 = por %p288, %p289
      %p291 = scmp.ne.s32.totalorder %s283, %s286
      %p292 = scmp.eq.s32.totalorder %s22, 0
      %p293 = por %p291, %p292
      %p294 = scmp.ne.s32.totalorder %s283, %s286
      %p295 = scmp.eq.s32.totalorder %s27, 1
      %p296 = por %p294, %p295
      %p297 = scmp.ne.s32.totalorder %s286, %s287
      %p298 = scmp.eq.s32.totalorder %s27, 0
      %p299 = por %p297, %p298
      %p300 = scmp.ne.s32.totalorder %s286, %s287
      %p301 = scmp.eq.s32.totalorder %s28, 1
      %p302 = por %p300, %p301
      %p304 = scmp.ne.s32.totalorder %s287, %s303
      %p305 = scmp.eq.s32.totalorder %s28, 0
      %p306 = por %p304, %p305
      %p307 = scmp.le.s32.totalorder 1, %s22
      %p308 = scmp.lt.s32.totalorder %s22, 3
      %p309 = pnand %p307, %p308
      %p310 = pneg %p309
      // Predicated region
      $region9: #{bsr_forward.1} parent=5 // pred_check
        _
      $region10: #{bsr_forward.1} parent=5 // pred_check_branch
        %312 = sbr.rel (%p309) target = $region12
      $region11: #{bsr_forward.1} parent=5 // pred_region
        %s313 = ssub.s32 %s22, 1
        // Predicated region
        $region13: #{bsr_forward.1} parent=11 // pred_check
          %p314 = pneg %p95
        $region14: #{bsr_forward.1} parent=11 // pred_check_branch
          %316 = sbr.rel (%p314) target = $region16
        $region15: #{bsr_forward.1} parent=11 // pred_region
          _
        $region16: #{bsr_forward.1} parent=11 // pred_fallthru
          _
        // Predicated region
        $region17: #{bsr_forward.1} parent=11 // pred_check
          %p317 = pneg %p116
        $region18: #{bsr_forward.1} parent=11 // pred_check_branch
          %319 = sbr.rel (%p317) target = $region20
        $region19: #{bsr_forward.1} parent=11 // pred_region
          _
        $region20: #{bsr_forward.1} parent=11 // pred_fallthru
          _
        // Predicated region
        $region21: #{bsr_forward.1} parent=11 // pred_check
          %p320 = pneg %p137
        $region22: #{bsr_forward.1} parent=11 // pred_check_branch
          %322 = sbr.rel (%p320) target = $region24
        $region23: #{bsr_forward.1} parent=11 // pred_region
          _
        $region24: #{bsr_forward.1} parent=11 // pred_fallthru
          _
        // Predicated region
        $region25: #{bsr_forward.1} parent=11 // pred_check
          %p323 = pneg %p158
        $region26: #{bsr_forward.1} parent=11 // pred_check_branch
          %325 = sbr.rel (%p323) target = $region28
        $region27: #{bsr_forward.1} parent=11 // pred_region
          _
        $region28: #{bsr_forward.1} parent=11 // pred_fallthru
          _
        // Predicated region
        $region29: #{bsr_forward.1} parent=11 // pred_check
          %p326 = pneg %p179
        $region30: #{bsr_forward.1} parent=11 // pred_check_branch
          %328 = sbr.rel (%p326) target = $region32
        $region31: #{bsr_forward.1} parent=11 // pred_region
          _
        $region32: #{bsr_forward.1} parent=11 // pred_fallthru
          _
        // Predicated region
        $region33: #{bsr_forward.1} parent=11 // pred_check
          %p329 = pneg %p200
        $region34: #{bsr_forward.1} parent=11 // pred_check_branch
          %331 = sbr.rel (%p329) target = $region36
        $region35: #{bsr_forward.1} parent=11 // pred_region
          _
        $region36: #{bsr_forward.1} parent=11 // pred_fallthru
          _
        // Predicated region
        $region37: #{bsr_forward.1} parent=11 // pred_check
          %p332 = pneg %p221
        $region38: #{bsr_forward.1} parent=11 // pred_check_branch
          %334 = sbr.rel (%p332) target = $region40
        $region39: #{bsr_forward.1} parent=11 // pred_region
          %s336 = ssub.s32 64, 64
          %337 = vsyncadd [#allocation4], %s336
          %s339 = sshll.u32 %s8, 4
          %s340 = int_to_ptr.vmem [resolvable:$true] %s339
          %342 = dma.vmem_to_smem %s340, 64, [#allocation2], [#allocation4]
        $region40: #{bsr_forward.1} parent=11 // pred_fallthru
          _
      $region12: #{bsr_forward.1} parent=5 // pred_fallthru
        _
      %p343 = scmp.lt.s32.totalorder %s22, 2
      // Predicated region
      $region41: #{bsr_forward.1} parent=5 // pred_check
        %p344 = pneg %p343
      $region42: #{bsr_forward.1} parent=5 // pred_check_branch
        %346 = sbr.rel (%p344) target = $region44
      $region43: #{bsr_forward.1} parent=5 // pred_region
        // Predicated region
        $region45: #{bsr_forward.1} parent=43 // pred_check
          %p347 = pneg %p42
        $region46: #{bsr_forward.1} parent=43 // pred_check_branch
          %349 = sbr.rel (%p347) target = $region48
        $region47: #{bsr_forward.1} parent=43 // pred_region
          %p350 = scmp.lt.s32.totalorder %s22, 1
          %s351 = scalar_select %p350, %s22, 1
          %s352 = smul.addr %s351, 4
          %s353 = smul.addr %s352, 8
          %s354 = scalar_lea.vmem %s0, %s353
        $region48: #{bsr_forward.1} parent=43 // pred_fallthru
          _
        // Predicated region
        $region49: #{bsr_forward.1} parent=43 // pred_check
          %p355 = pneg %p68
        $region50: #{bsr_forward.1} parent=43 // pred_check_branch
          %357 = sbr.rel (%p355) target = $region52
        $region51: #{bsr_forward.1} parent=43 // pred_region
          %p358 = scmp.lt.s32.totalorder %s22, 1
          %s359 = scalar_select %p358, %s22, 1
          %s360 = smul.addr %s359, 4
          %s361 = smul.addr %s360, 8
          %s362 = scalar_lea.vmem %s1, %s361
        $region52: #{bsr_forward.1} parent=43 // pred_fallthru
          _
      $region44: #{bsr_forward.1} parent=5 // pred_fallthru
        _
      %p363 = scmp.le.s32.totalorder 1, %s22
      %p364 = scmp.lt.s32.totalorder %s22, 3
      %p365 = pnand %p363, %p364
      %p366 = pneg %p365
      // Predicated region
      $region53: #{bsr_forward.1} parent=5 // pred_check
        _
      $region54: #{bsr_forward.1} parent=5 // pred_check_branch
        %368 = sbr.rel (%p365) target = $region56
      $region55: #{bsr_forward.1} parent=5 // pred_region
        %s369 = ssub.s32 %s22, 1
        // Predicated region
        $region57: #{bsr_forward.1} parent=55 // pred_check
          %p370 = pneg %p221
        $region58: #{bsr_forward.1} parent=55 // pred_check_branch
          %372 = sbr.rel (%p370) target = $region60
        $region59: #{bsr_forward.1} parent=55 // pred_region
          %373 = dma.done [#allocation4], 64
        $region60: #{bsr_forward.1} parent=55 // pred_fallthru
          _
        %374 = sfence
        %p375 = scmp.lt.s32.totalorder %s27, 1
        %s376 = scalar_select %p375, %s27, 1
        %s377 = smul.addr %s376, 4
        %s378 = smul.addr %s377, 8
        %s379 = scalar_lea.vmem %s0, %s378
        %p380 = pneg %p48
        %p381 = pneg %p45
        %p382 = scmp.lt.s32.totalorder %s27, 1
        %s383 = scalar_select %p382, %s27, 1
        %s384 = smul.addr %s383, 4
        %s385 = smul.addr %s384, 8
        %s386 = scalar_lea.vmem %s1, %s385
        %p387 = pneg %p74
        %p388 = pneg %p71
        %p389 = pneg %p95
        %p390 = pneg %p92
        %p391 = pneg %p116
        %p392 = pneg %p113
        %p393 = pneg %p137
        %p394 = pneg %p134
        %p395 = pneg %p158
        %p396 = pneg %p155
        %p397 = pneg %p179
        %p398 = pneg %p176
        %p399 = pneg %p200
        %p400 = pneg %p197
        %p401 = pneg %p221
        %p402 = pneg %p218
        %p403 = pneg %p247
        %p404 = pneg %p244
        %p405 = scmp.lt.s32.totalorder %s27, 1
        %s406 = scalar_select %p405, %s27, 1
        %s407 = smul.addr %s406, 4
        %s408 = smul.addr %s407, 8
        %s409 = scalar_lea.vmem %s9, %s408
        %p410 = pneg %p273
        %p411 = pneg %p270
        %p412 = scmp.lt.s32.totalorder %s27, 1
        %s413 = scalar_select %p412, %s27, 1
        %s414 = smul.addr %s413, 4
        %s415 = smul.addr %s414, 8
        %s416 = scalar_lea.vmem %s10, %s415
        %p417 = pneg %p299
        %p418 = pneg %p296
        %s419 = sand.u32 %s286, 1
        %s420 = scalar_lea.sflag [#allocation3], %s419
        %s421 = sand.u32 %s286, 1
        %s422 = smul.addr %s421, 24
        %s423 = scalar_lea.vmem [#allocation5], %s422
        %p424 = scmp.lt.s32.totalorder %s27, 1
        %s425 = scalar_select %p424, %s27, 1
        %s426 = smul.addr %s425, 4
        %s427 = smul.addr %s426, 8
        %s428 = scalar_lea.vmem %s0, %s427
        %p429 = scmp.lt.s32.totalorder %s27, 1
        %s430 = scalar_select %p429, %s27, 1
        %s431 = smul.addr %s430, 4
        %s432 = smul.addr %s431, 8
        %s433 = scalar_lea.vmem %s1, %s432
        %p434 = scmp.lt.s32.totalorder %s27, 1
        %s435 = scalar_select %p434, %s27, 1
        %s436 = smul.addr %s435, 4
        %s437 = smul.addr %s436, 8
        %s438 = scalar_lea.vmem %s9, %s437
        %p439 = scmp.lt.s32.totalorder %s27, 1
        %s440 = scalar_select %p439, %s27, 1
        %s441 = smul.addr %s440, 4
        %s442 = smul.addr %s441, 8
        %s443 = scalar_lea.vmem %s10, %s442
        %v444 = vld [vmem:[%s428] sm:$0xff]
        %v445 = vld [vmem:[%s428 + $0x8] sm:$0xff]
        %v446 = vld [vmem:[%s428 + $0x10] sm:$0xff]
        %v447 = vld [vmem:[%s428 + $0x18] sm:$0xff]
        %v448 = vld [vmem:[%s2] sm:$0xff]
        %v449 = vld [vmem:[%s3] sm:$0xff]
        %vm450 = vcmask 64512
        %v452 = vsel %vm450, %v444, 0
        %v455 = vsel %vm450, %v445, 0
        %v458 = vsel %vm450, %v446, 0
        %v461 = vsel %vm450, %v447, 0
        %463 = vmatprep.subr.mxu0 0.0
        %464 = vmatpush1.msra.mxu0 %v449
        %465 = vmatprep.subr.mxu0 0.0
        %466 = vmatpush1.msra.mxu0 0.0
        %467 = vmatprep.subr.mxu0 0.0
        %468 = vmatpush1.msra.mxu0 0.0
        %469 = vmatprep.subr.mxu0 0.0
        %470 = vmatpush1.msra.mxu0 0.0
        %471 = vmatprep.subr.mxu0 0.0
        %472 = vmatpush1.msra.mxu0 0.0
        %473 = vmatprep.subr.mxu0 0.0
        %474 = vmatpush1.msra.mxu0 0.0
        %475 = vmatprep.subr.mxu0 0.0
        %476 = vmatpush1.msra.mxu0 0.0
        %477 = vmatprep.subr.mxu0 0.0
        %478 = vmatpush1.msra.mxu0 0.0
        %479 = vmatprep.subr.mxu0 0.0
        %480 = vmatpush1.msra.mxu0 0.0
        %481 = vmatprep.subr.mxu0 0.0
        %482 = vmatpush1.msra.mxu0 0.0
        %483 = vmatprep.subr.mxu0 0.0
        %484 = vmatpush1.msra.mxu0 0.0
        %485 = vmatprep.subr.mxu0 0.0
        %486 = vmatpush1.msra.mxu0 0.0
        %487 = vmatprep.subr.mxu0 0.0
        %488 = vmatpush1.msra.mxu0 0.0
        %489 = vmatprep.subr.mxu0 0.0
        %490 = vmatpush1.msra.mxu0 0.0
        %491 = vmatprep.subr.mxu0 0.0
        %492 = vmatpush1.msra.mxu0 0.0
        %493 = vmatprep.subr.mxu0 0.0
        %494 = vmatpush1.msra.mxu0 0.0
        %495 = vmatprep.subr.mxu0 0.0
        %496 = vmatpush1.msra.mxu0 0.0
        %497 = vmatprep.subr.mxu0 0.0
        %498 = vmatpush1.msra.mxu0 0.0
        %499 = vmatprep.subr.mxu0 0.0
        %500 = vmatpush1.msra.mxu0 0.0
        %501 = vmatprep.subr.mxu0 0.0
        %502 = vmatpush1.msra.mxu0 0.0
        %503 = vmatprep.subr.mxu0 0.0
        %504 = vmatpush1.msra.mxu0 0.0
        %505 = vmatprep.subr.mxu0 0.0
        %506 = vmatpush1.msra.mxu0 0.0
        %507 = vmatprep.subr.mxu0 0.0
        %508 = vmatpush1.msra.mxu0 0.0
        %509 = vmatprep.subr.mxu0 0.0
        %510 = vmatpush1.msra.mxu0 0.0
        %511 = vmatprep.subr.mxu0 0.0
        %512 = vmatpush1.msra.mxu0 0.0
        %513 = vmatprep.subr.mxu0 0.0
        %514 = vmatpush1.msra.mxu0 0.0
        %515 = vmatprep.subr.mxu0 0.0
        %516 = vmatpush1.msra.mxu0 0.0
        %517 = vmatprep.subr.mxu0 0.0
        %518 = vmatpush1.msra.mxu0 0.0
        %519 = vmatprep.subr.mxu0 0.0
        %520 = vmatpush1.msra.mxu0 0.0
        %521 = vmatprep.subr.mxu0 0.0
        %522 = vmatpush1.msra.mxu0 0.0
        %523 = vmatprep.subr.mxu0 0.0
        %524 = vmatpush1.msra.mxu0 0.0
        %525 = vmatprep.subr.mxu0 0.0
        %526 = vmatpush1.msra.mxu0 0.0
        %527 = vmatprep.mubr.f32.mxu0 0.0
        %528 = vmatmul.mubr.f32.gmra.mrb[0].mxu0 %v452
        %v529 = vpop.f32.mrb[0].mxu0
        %v530 = vadd.f32 0.0, %v529
        %v531 = vpop.f32.mrb[0].mxu0
        %532 = vmatprep.mubr.f32.mxu0 0.0
        %533 = vmatmul.mubr.f32.gmra.mrb[0].mxu0 %v455
        %v534 = vpop.f32.mrb[0].mxu0
        %v535 = vadd.f32 0.0, %v534
        %v536 = vpop.f32.mrb[0].mxu0
        %537 = vmatprep.mubr.f32.mxu0 0.0
        %538 = vmatmul.mubr.f32.gmra.mrb[0].mxu0 %v458
        %v539 = vpop.f32.mrb[0].mxu0
        %v540 = vadd.f32 0.0, %v539
        %v541 = vpop.f32.mrb[0].mxu0
        %542 = vmatprep.mubr.f32.mxu0 0.0
        %543 = vmatmul.mubr.f32.gmra.mrb[0].mxu0 %v461
        %v544 = vpop.f32.mrb[0].mxu0
        %v545 = vadd.f32 0.0, %v544
        %v546 = vpop.f32.mrb[0].mxu0
        %547 = vdwg.mxu0
        %v549 = vsel %vm450, %v448, 0
        %551 = vmatprep.subr.mxu0 0.0
        %552 = vmatpush1.msra.mxu0 %v530
        %553 = vmatprep.subr.mxu0 0.0
        %554 = vmatpush1.msra.mxu0 0.0
        %555 = vmatprep.subr.mxu0 0.0
        %556 = vmatpush1.msra.mxu0 0.0
        %557 = vmatprep.subr.mxu0 0.0
        %558 = vmatpush1.msra.mxu0 0.0
        %559 = vmatprep.subr.mxu0 0.0
        %560 = vmatpush1.msra.mxu0 0.0
        %561 = vmatprep.subr.mxu0 0.0
        %562 = vmatpush1.msra.mxu0 0.0
        %563 = vmatprep.subr.mxu0 0.0
        %564 = vmatpush1.msra.mxu0 0.0
        %565 = vmatprep.subr.mxu0 0.0
        %566 = vmatpush1.msra.mxu0 0.0
        %567 = vmatprep.subr.mxu0 0.0
        %568 = vmatpush1.msra.mxu0 0.0
        %569 = vmatprep.subr.mxu0 0.0
        %570 = vmatpush1.msra.mxu0 0.0
        %571 = vmatprep.subr.mxu0 0.0
        %572 = vmatpush1.msra.mxu0 0.0
        %573 = vmatprep.subr.mxu0 0.0
        %574 = vmatpush1.msra.mxu0 0.0
        %575 = vmatprep.subr.mxu0 0.0
        %576 = vmatpush1.msra.mxu0 0.0
        %577 = vmatprep.subr.mxu0 0.0
        %578 = vmatpush1.msra.mxu0 0.0
        %579 = vmatprep.subr.mxu0 0.0
        %580 = vmatpush1.msra.mxu0 0.0
        %581 = vmatprep.subr.mxu0 0.0
        %582 = vmatpush1.msra.mxu0 0.0
        %583 = vmatprep.subr.mxu0 0.0
        %584 = vmatpush1.msra.mxu0 0.0
        %585 = vmatprep.subr.mxu0 0.0
        %586 = vmatpush1.msra.mxu0 0.0
        %587 = vmatprep.subr.mxu0 0.0
        %588 = vmatpush1.msra.mxu0 0.0
        %589 = vmatprep.subr.mxu0 0.0
        %590 = vmatpush1.msra.mxu0 0.0
        %591 = vmatprep.subr.mxu0 0.0
        %592 = vmatpush1.msra.mxu0 0.0
        %593 = vmatprep.subr.mxu0 0.0
        %594 = vmatpush1.msra.mxu0 0.0
        %595 = vmatprep.subr.mxu0 0.0
        %596 = vmatpush1.msra.mxu0 0.0
        %597 = vmatprep.subr.mxu0 0.0
        %598 = vmatpush1.msra.mxu0 0.0
        %599 = vmatprep.subr.mxu0 0.0
        %600 = vmatpush1.msra.mxu0 0.0
        %601 = vmatprep.subr.mxu0 0.0
        %602 = vmatpush1.msra.mxu0 0.0
        %603 = vmatprep.subr.mxu0 0.0
        %604 = vmatpush1.msra.mxu0 0.0
        %605 = vmatprep.subr.mxu0 0.0
        %606 = vmatpush1.msra.mxu0 0.0
        %607 = vmatprep.subr.mxu0 0.0
        %608 = vmatpush1.msra.mxu0 0.0
        %609 = vmatprep.subr.mxu0 0.0
        %610 = vmatpush1.msra.mxu0 0.0
        %611 = vmatprep.subr.mxu0 0.0
        %612 = vmatpush1.msra.mxu0 0.0
        %613 = vmatprep.subr.mxu0 0.0
        %614 = vmatpush1.msra.mxu0 0.0
        %615 = vmatprep.mubr.f32.mxu0 0.0
        %616 = vmatmul.mubr.f32.gmra.mrb[0].mxu0 %v549
        %v617 = vpop.f32.mrb[0].mxu0
        %v618 = vadd.f32 0.0, %v617
        %v619 = vpop.f32.mrb[0].mxu0
        %620 = vdwg.mxu0
        %621 = vst.msk [vmem:[%s438] sm:$0xff] %vm450, %v618
        %622 = vmatprep.subr.mxu0 0.0
        %623 = vmatpush1.msra.mxu0 %v535
        %624 = vmatprep.subr.mxu0 0.0
        %625 = vmatpush1.msra.mxu0 0.0
        %626 = vmatprep.subr.mxu0 0.0
        %627 = vmatpush1.msra.mxu0 0.0
        %628 = vmatprep.subr.mxu0 0.0
        %629 = vmatpush1.msra.mxu0 0.0
        %630 = vmatprep.subr.mxu0 0.0
        %631 = vmatpush1.msra.mxu0 0.0
        %632 = vmatprep.subr.mxu0 0.0
        %633 = vmatpush1.msra.mxu0 0.0
        %634 = vmatprep.subr.mxu0 0.0
        %635 = vmatpush1.msra.mxu0 0.0
        %636 = vmatprep.subr.mxu0 0.0
        %637 = vmatpush1.msra.mxu0 0.0
        %638 = vmatprep.subr.mxu0 0.0
        %639 = vmatpush1.msra.mxu0 0.0
        %640 = vmatprep.subr.mxu0 0.0
        %641 = vmatpush1.msra.mxu0 0.0
        %642 = vmatprep.subr.mxu0 0.0
        %643 = vmatpush1.msra.mxu0 0.0
        %644 = vmatprep.subr.mxu0 0.0
        %645 = vmatpush1.msra.mxu0 0.0
        %646 = vmatprep.subr.mxu0 0.0
        %647 = vmatpush1.msra.mxu0 0.0
        %648 = vmatprep.subr.mxu0 0.0
        %649 = vmatpush1.msra.mxu0 0.0
        %650 = vmatprep.subr.mxu0 0.0
        %651 = vmatpush1.msra.mxu0 0.0
        %652 = vmatprep.subr.mxu0 0.0
        %653 = vmatpush1.msra.mxu0 0.0
        %654 = vmatprep.subr.mxu0 0.0
        %655 = vmatpush1.msra.mxu0 0.0
        %656 = vmatprep.subr.mxu0 0.0
        %657 = vmatpush1.msra.mxu0 0.0
        %658 = vmatprep.subr.mxu0 0.0
        %659 = vmatpush1.msra.mxu0 0.0
        %660 = vmatprep.subr.mxu0 0.0
        %661 = vmatpush1.msra.mxu0 0.0
        %662 = vmatprep.subr.mxu0 0.0
        %663 = vmatpush1.msra.mxu0 0.0
        %664 = vmatprep.subr.mxu0 0.0
        %665 = vmatpush1.msra.mxu0 0.0
        %666 = vmatprep.subr.mxu0 0.0
        %667 = vmatpush1.msra.mxu0 0.0
        %668 = vmatprep.subr.mxu0 0.0
        %669 = vmatpush1.msra.mxu0 0.0
        %670 = vmatprep.subr.mxu0 0.0
        %671 = vmatpush1.msra.mxu0 0.0
        %672 = vmatprep.subr.mxu0 0.0
        %673 = vmatpush1.msra.mxu0 0.0
        %674 = vmatprep.subr.mxu0 0.0
        %675 = vmatpush1.msra.mxu0 0.0
        %676 = vmatprep.subr.mxu0 0.0
        %677 = vmatpush1.msra.mxu0 0.0
        %678 = vmatprep.subr.mxu0 0.0
        %679 = vmatpush1.msra.mxu0 0.0
        %680 = vmatprep.subr.mxu0 0.0
        %681 = vmatpush1.msra.mxu0 0.0
        %682 = vmatprep.subr.mxu0 0.0
        %683 = vmatpush1.msra.mxu0 0.0
        %684 = vmatprep.subr.mxu0 0.0
        %685 = vmatpush1.msra.mxu0 0.0
        %686 = vmatprep.mubr.f32.mxu0 0.0
        %687 = vmatmul.mubr.f32.gmra.mrb[0].mxu0 %v549
        %v688 = vpop.f32.mrb[0].mxu0
        %v689 = vadd.f32 0.0, %v688
        %v690 = vpop.f32.mrb[0].mxu0
        %691 = vdwg.mxu0
        %s692 = scalar_lea.vmem %s438, 8
        %693 = vst.msk [vmem:[%s692] sm:$0xff] %vm450, %v689
        %694 = vmatprep.subr.mxu0 0.0
        %695 = vmatpush1.msra.mxu0 %v540
        %696 = vmatprep.subr.mxu0 0.0
        %697 = vmatpush1.msra.mxu0 0.0
        %698 = vmatprep.subr.mxu0 0.0
        %699 = vmatpush1.msra.mxu0 0.0
        %700 = vmatprep.subr.mxu0 0.0
        %701 = vmatpush1.msra.mxu0 0.0
        %702 = vmatprep.subr.mxu0 0.0
        %703 = vmatpush1.msra.mxu0 0.0
        %704 = vmatprep.subr.mxu0 0.0
        %705 = vmatpush1.msra.mxu0 0.0
        %706 = vmatprep.subr.mxu0 0.0
        %707 = vmatpush1.msra.mxu0 0.0
        %708 = vmatprep.subr.mxu0 0.0
        %709 = vmatpush1.msra.mxu0 0.0
        %710 = vmatprep.subr.mxu0 0.0
        %711 = vmatpush1.msra.mxu0 0.0
        %712 = vmatprep.subr.mxu0 0.0
        %713 = vmatpush1.msra.mxu0 0.0
        %714 = vmatprep.subr.mxu0 0.0
        %715 = vmatpush1.msra.mxu0 0.0
        %716 = vmatprep.subr.mxu0 0.0
        %717 = vmatpush1.msra.mxu0 0.0
        %718 = vmatprep.subr.mxu0 0.0
        %719 = vmatpush1.msra.mxu0 0.0
        %720 = vmatprep.subr.mxu0 0.0
        %721 = vmatpush1.msra.mxu0 0.0
        %722 = vmatprep.subr.mxu0 0.0
        %723 = vmatpush1.msra.mxu0 0.0
        %724 = vmatprep.subr.mxu0 0.0
        %725 = vmatpush1.msra.mxu0 0.0
        %726 = vmatprep.subr.mxu0 0.0
        %727 = vmatpush1.msra.mxu0 0.0
        %728 = vmatprep.subr.mxu0 0.0
        %729 = vmatpush1.msra.mxu0 0.0
        %730 = vmatprep.subr.mxu0 0.0
        %731 = vmatpush1.msra.mxu0 0.0
        %732 = vmatprep.subr.mxu0 0.0
        %733 = vmatpush1.msra.mxu0 0.0
        %734 = vmatprep.subr.mxu0 0.0
        %735 = vmatpush1.msra.mxu0 0.0
        %736 = vmatprep.subr.mxu0 0.0
        %737 = vmatpush1.msra.mxu0 0.0
        %738 = vmatprep.subr.mxu0 0.0
        %739 = vmatpush1.msra.mxu0 0.0
        %740 = vmatprep.subr.mxu0 0.0
        %741 = vmatpush1.msra.mxu0 0.0
        %742 = vmatprep.subr.mxu0 0.0
        %743 = vmatpush1.msra.mxu0 0.0
        %744 = vmatprep.subr.mxu0 0.0
        %745 = vmatpush1.msra.mxu0 0.0
        %746 = vmatprep.subr.mxu0 0.0
        %747 = vmatpush1.msra.mxu0 0.0
        %748 = vmatprep.subr.mxu0 0.0
        %749 = vmatpush1.msra.mxu0 0.0
        %750 = vmatprep.subr.mxu0 0.0
        %751 = vmatpush1.msra.mxu0 0.0
        %752 = vmatprep.subr.mxu0 0.0
        %753 = vmatpush1.msra.mxu0 0.0
        %754 = vmatprep.subr.mxu0 0.0
        %755 = vmatpush1.msra.mxu0 0.0
        %756 = vmatprep.subr.mxu0 0.0
        %757 = vmatpush1.msra.mxu0 0.0
        %758 = vmatprep.mubr.f32.mxu0 0.0
        %759 = vmatmul.mubr.f32.gmra.mrb[0].mxu0 %v549
        %v760 = vpop.f32.mrb[0].mxu0
        %v761 = vadd.f32 0.0, %v760
        %v762 = vpop.f32.mrb[0].mxu0
        %763 = vdwg.mxu0
        %s764 = scalar_lea.vmem %s438, 16
        %765 = vst.msk [vmem:[%s764] sm:$0xff] %vm450, %v761
        %766 = vmatprep.subr.mxu0 0.0
        %767 = vmatpush1.msra.mxu0 %v545
        %768 = vmatprep.subr.mxu0 0.0
        %769 = vmatpush1.msra.mxu0 0.0
        %770 = vmatprep.subr.mxu0 0.0
        %771 = vmatpush1.msra.mxu0 0.0
        %772 = vmatprep.subr.mxu0 0.0
        %773 = vmatpush1.msra.mxu0 0.0
        %774 = vmatprep.subr.mxu0 0.0
        %775 = vmatpush1.msra.mxu0 0.0
        %776 = vmatprep.subr.mxu0 0.0
        %777 = vmatpush1.msra.mxu0 0.0
        %778 = vmatprep.subr.mxu0 0.0
        %779 = vmatpush1.msra.mxu0 0.0
        %780 = vmatprep.subr.mxu0 0.0
        %781 = vmatpush1.msra.mxu0 0.0
        %782 = vmatprep.subr.mxu0 0.0
        %783 = vmatpush1.msra.mxu0 0.0
        %784 = vmatprep.subr.mxu0 0.0
        %785 = vmatpush1.msra.mxu0 0.0
        %786 = vmatprep.subr.mxu0 0.0
        %787 = vmatpush1.msra.mxu0 0.0
        %788 = vmatprep.subr.mxu0 0.0
        %789 = vmatpush1.msra.mxu0 0.0
        %790 = vmatprep.subr.mxu0 0.0
        %791 = vmatpush1.msra.mxu0 0.0
        %792 = vmatprep.subr.mxu0 0.0
        %793 = vmatpush1.msra.mxu0 0.0
        %794 = vmatprep.subr.mxu0 0.0
        %795 = vmatpush1.msra.mxu0 0.0
        %796 = vmatprep.subr.mxu0 0.0
        %797 = vmatpush1.msra.mxu0 0.0
        %798 = vmatprep.subr.mxu0 0.0
        %799 = vmatpush1.msra.mxu0 0.0
        %800 = vmatprep.subr.mxu0 0.0
        %801 = vmatpush1.msra.mxu0 0.0
        %802 = vmatprep.subr.mxu0 0.0
        %803 = vmatpush1.msra.mxu0 0.0
        %804 = vmatprep.subr.mxu0 0.0
        %805 = vmatpush1.msra.mxu0 0.0
        %806 = vmatprep.subr.mxu0 0.0
        %807 = vmatpush1.msra.mxu0 0.0
        %808 = vmatprep.subr.mxu0 0.0
        %809 = vmatpush1.msra.mxu0 0.0
        %810 = vmatprep.subr.mxu0 0.0
        %811 = vmatpush1.msra.mxu0 0.0
        %812 = vmatprep.subr.mxu0 0.0
        %813 = vmatpush1.msra.mxu0 0.0
        %814 = vmatprep.subr.mxu0 0.0
        %815 = vmatpush1.msra.mxu0 0.0
        %816 = vmatprep.subr.mxu0 0.0
        %817 = vmatpush1.msra.mxu0 0.0
        %818 = vmatprep.subr.mxu0 0.0
        %819 = vmatpush1.msra.mxu0 0.0
        %820 = vmatprep.subr.mxu0 0.0
        %821 = vmatpush1.msra.mxu0 0.0
        %822 = vmatprep.subr.mxu0 0.0
        %823 = vmatpush1.msra.mxu0 0.0
        %824 = vmatprep.subr.mxu0 0.0
        %825 = vmatpush1.msra.mxu0 0.0
        %826 = vmatprep.subr.mxu0 0.0
        %827 = vmatpush1.msra.mxu0 0.0
        %828 = vmatprep.subr.mxu0 0.0
        %829 = vmatpush1.msra.mxu0 0.0
        %830 = vmatprep.mubr.f32.mxu0 0.0
        %831 = vmatmul.mubr.f32.gmra.mrb[0].mxu0 %v549
        %v832 = vpop.f32.mrb[0].mxu0
        %v833 = vadd.f32 0.0, %v832
        %v834 = vpop.f32.mrb[0].mxu0
        %835 = vdwg.mxu0
        %s836 = scalar_lea.vmem %s438, 24
        %837 = vst.msk [vmem:[%s836] sm:$0xff] %vm450, %v833
        %v838 = vld [vmem:[%s438] sm:$0xff]
        %v839 = vld [vmem:[%s438 + $0x8] sm:$0xff]
        %v840 = vld [vmem:[%s438 + $0x10] sm:$0xff]
        %v841 = vld [vmem:[%s438 + $0x18] sm:$0xff]
        %v842 = vld [vmem:[%s433] sm:$0xff]
        %v843 = vld [vmem:[%s433 + $0x8] sm:$0xff]
        %v844 = vld [vmem:[%s433 + $0x10] sm:$0xff]
        %v845 = vld [vmem:[%s433 + $0x18] sm:$0xff]
        %v846 = vadd.f32 %v838, %v842
        %v847 = vadd.f32 %v839, %v843
        %v848 = vadd.f32 %v840, %v844
        %v849 = vadd.f32 %v841, %v845
        %850 = vst.msk [vmem:[%s443] sm:$0xff] %vm450, %v846
        %851 = vst.msk [vmem:[%s443 + $0x8] sm:$0xff] %vm450, %v847
        %852 = vst.msk [vmem:[%s443 + $0x10] sm:$0xff] %vm450, %v848
        %853 = vst.msk [vmem:[%s443 + $0x18] sm:$0xff] %vm450, %v849
        %v854 = vld [vmem:[%s4] sm:$0xff]
        %v855 = vld [vmem:[%s5] sm:$0xff]
        %v857 = vsel %vm450, %v846, 0
        %v860 = vsel %vm450, %v847, 0
        %v863 = vsel %vm450, %v848, 0
        %v866 = vsel %vm450, %v849, 0
        %868 = vmatprep.subr.mxu0 0.0
        %869 = vmatpush1.msra.mxu0 %v855
        %870 = vmatprep.subr.mxu0 0.0
        %871 = vmatpush1.msra.mxu0 0.0
        %872 = vmatprep.subr.mxu0 0.0
        %873 = vmatpush1.msra.mxu0 0.0
        %874 = vmatprep.subr.mxu0 0.0
        %875 = vmatpush1.msra.mxu0 0.0
        %876 = vmatprep.subr.mxu0 0.0
        %877 = vmatpush1.msra.mxu0 0.0
        %878 = vmatprep.subr.mxu0 0.0
        %879 = vmatpush1.msra.mxu0 0.0
        %880 = vmatprep.subr.mxu0 0.0
        %881 = vmatpush1.msra.mxu0 0.0
        %882 = vmatprep.subr.mxu0 0.0
        %883 = vmatpush1.msra.mxu0 0.0
        %884 = vmatprep.subr.mxu0 0.0
        %885 = vmatpush1.msra.mxu0 0.0
        %886 = vmatprep.subr.mxu0 0.0
        %887 = vmatpush1.msra.mxu0 0.0
        %888 = vmatprep.subr.mxu0 0.0
        %889 = vmatpush1.msra.mxu0 0.0
        %890 = vmatprep.subr.mxu0 0.0
        %891 = vmatpush1.msra.mxu0 0.0
        %892 = vmatprep.subr.mxu0 0.0
        %893 = vmatpush1.msra.mxu0 0.0
        %894 = vmatprep.subr.mxu0 0.0
        %895 = vmatpush1.msra.mxu0 0.0
        %896 = vmatprep.subr.mxu0 0.0
        %897 = vmatpush1.msra.mxu0 0.0
        %898 = vmatprep.subr.mxu0 0.0
        %899 = vmatpush1.msra.mxu0 0.0
        %900 = vmatprep.subr.mxu0 0.0
        %901 = vmatpush1.msra.mxu0 0.0
        %902 = vmatprep.subr.mxu0 0.0
        %903 = vmatpush1.msra.mxu0 0.0
        %904 = vmatprep.subr.mxu0 0.0
        %905 = vmatpush1.msra.mxu0 0.0
        %906 = vmatprep.subr.mxu0 0.0
        %907 = vmatpush1.msra.mxu0 0.0
        %908 = vmatprep.subr.mxu0 0.0
        %909 = vmatpush1.msra.mxu0 0.0
        %910 = vmatprep.subr.mxu0 0.0
        %911 = vmatpush1.msra.mxu0 0.0
        %912 = vmatprep.subr.mxu0 0.0
        %913 = vmatpush1.msra.mxu0 0.0
        %914 = vmatprep.subr.mxu0 0.0
        %915 = vmatpush1.msra.mxu0 0.0
        %916 = vmatprep.subr.mxu0 0.0
        %917 = vmatpush1.msra.mxu0 0.0
        %918 = vmatprep.subr.mxu0 0.0
        %919 = vmatpush1.msra.mxu0 0.0
        %920 = vmatprep.subr.mxu0 0.0
        %921 = vmatpush1.msra.mxu0 0.0
        %922 = vmatprep.subr.mxu0 0.0
        %923 = vmatpush1.msra.mxu0 0.0
        %924 = vmatprep.subr.mxu0 0.0
        %925 = vmatpush1.msra.mxu0 0.0
        %926 = vmatprep.subr.mxu0 0.0
        %927 = vmatpush1.msra.mxu0 0.0
        %928 = vmatprep.subr.mxu0 0.0
        %929 = vmatpush1.msra.mxu0 0.0
        %930 = vmatprep.subr.mxu0 0.0
        %931 = vmatpush1.msra.mxu0 0.0
        %932 = vmatprep.mubr.f32.mxu0 0.0
        %933 = vmatmul.mubr.f32.gmra.mrb[0].mxu0 %v857
        %v934 = vpop.f32.mrb[0].mxu0
        %v935 = vadd.f32 0.0, %v934
        %v936 = vpop.f32.mrb[0].mxu0
        %937 = vmatprep.mubr.f32.mxu0 0.0
        %938 = vmatmul.mubr.f32.gmra.mrb[0].mxu0 %v860
        %v939 = vpop.f32.mrb[0].mxu0
        %v940 = vadd.f32 0.0, %v939
        %v941 = vpop.f32.mrb[0].mxu0
        %942 = vmatprep.mubr.f32.mxu0 0.0
        %943 = vmatmul.mubr.f32.gmra.mrb[0].mxu0 %v863
        %v944 = vpop.f32.mrb[0].mxu0
        %v945 = vadd.f32 0.0, %v944
        %v946 = vpop.f32.mrb[0].mxu0
        %947 = vmatprep.mubr.f32.mxu0 0.0
        %948 = vmatmul.mubr.f32.gmra.mrb[0].mxu0 %v866
        %v949 = vpop.f32.mrb[0].mxu0
        %v950 = vadd.f32 0.0, %v949
        %v951 = vpop.f32.mrb[0].mxu0
        %952 = vdwg.mxu0
        %v953 = vld [vmem:[%s6] sm:$0xff]
        %v955 = vsel %vm450, %v953, 0
        %957 = vmatprep.subr.mxu0 0.0
        %958 = vmatpush1.msra.mxu0 %v846
        %959 = vmatprep.subr.mxu0 0.0
        %960 = vmatpush1.msra.mxu0 0.0
        %961 = vmatprep.subr.mxu0 0.0
        %962 = vmatpush1.msra.mxu0 0.0
        %963 = vmatprep.subr.mxu0 0.0
        %964 = vmatpush1.msra.mxu0 0.0
        %965 = vmatprep.subr.mxu0 0.0
        %966 = vmatpush1.msra.mxu0 0.0
        %967 = vmatprep.subr.mxu0 0.0
        %968 = vmatpush1.msra.mxu0 0.0
        %969 = vmatprep.subr.mxu0 0.0
        %970 = vmatpush1.msra.mxu0 0.0
        %971 = vmatprep.subr.mxu0 0.0
        %972 = vmatpush1.msra.mxu0 0.0
        %973 = vmatprep.subr.mxu0 0.0
        %974 = vmatpush1.msra.mxu0 0.0
        %975 = vmatprep.subr.mxu0 0.0
        %976 = vmatpush1.msra.mxu0 0.0
        %977 = vmatprep.subr.mxu0 0.0
        %978 = vmatpush1.msra.mxu0 0.0
        %979 = vmatprep.subr.mxu0 0.0
        %980 = vmatpush1.msra.mxu0 0.0
        %981 = vmatprep.subr.mxu0 0.0
        %982 = vmatpush1.msra.mxu0 0.0
        %983 = vmatprep.subr.mxu0 0.0
        %984 = vmatpush1.msra.mxu0 0.0
        %985 = vmatprep.subr.mxu0 0.0
        %986 = vmatpush1.msra.mxu0 0.0
        %987 = vmatprep.subr.mxu0 0.0
        %988 = vmatpush1.msra.mxu0 0.0
        %989 = vmatprep.subr.mxu0 0.0
        %990 = vmatpush1.msra.mxu0 0.0
        %991 = vmatprep.subr.mxu0 0.0
        %992 = vmatpush1.msra.mxu0 0.0
        %993 = vmatprep.subr.mxu0 0.0
        %994 = vmatpush1.msra.mxu0 0.0
        %995 = vmatprep.subr.mxu0 0.0
        %996 = vmatpush1.msra.mxu0 0.0
        %997 = vmatprep.subr.mxu0 0.0
        %998 = vmatpush1.msra.mxu0 0.0
        %999 = vmatprep.subr.mxu0 0.0
        %1000 = vmatpush1.msra.mxu0 0.0
        %1001 = vmatprep.subr.mxu0 0.0
        %1002 = vmatpush1.msra.mxu0 0.0
        %1003 = vmatprep.subr.mxu0 0.0
        %1004 = vmatpush1.msra.mxu0 0.0
        %1005 = vmatprep.subr.mxu0 0.0
        %1006 = vmatpush1.msra.mxu0 0.0
        %1007 = vmatprep.subr.mxu0 0.0
        %1008 = vmatpush1.msra.mxu0 0.0
        %1009 = vmatprep.subr.mxu0 0.0
        %1010 = vmatpush1.msra.mxu0 0.0
        %1011 = vmatprep.subr.mxu0 0.0
        %1012 = vmatpush1.msra.mxu0 0.0
        %1013 = vmatprep.subr.mxu0 0.0
        %1014 = vmatpush1.msra.mxu0 0.0
        %1015 = vmatprep.subr.mxu0 0.0
        %1016 = vmatpush1.msra.mxu0 0.0
        %1017 = vmatprep.subr.mxu0 0.0
        %1018 = vmatpush1.msra.mxu0 0.0
        %1019 = vmatprep.subr.mxu0 0.0
        %1020 = vmatpush1.msra.mxu0 0.0
        %1021 = vmatprep.mubr.f32.mxu0 0.0
        %1022 = vmatmul.mubr.f32.gmra.mrb[0].mxu0 %v955
        %v1023 = vpop.f32.mrb[0].mxu0
        %v1024 = vadd.f32 0.0, %v1023
        %v1025 = vpop.f32.mrb[0].mxu0
        %1026 = vdwg.mxu0
        %v1027 = vld [vmem:[%s7] sm:$0xff]
        %v1029 = vsel %vm450, %v1024, 0
        %1031 = vmatprep.subr.mxu0 0.0
        %1032 = vmatpush1.msra.mxu0 %v1027
        %1033 = vmatprep.subr.mxu0 0.0
        %1034 = vmatpush1.msra.mxu0 0.0
        %1035 = vmatprep.subr.mxu0 0.0
        %1036 = vmatpush1.msra.mxu0 0.0
        %1037 = vmatprep.subr.mxu0 0.0
        %1038 = vmatpush1.msra.mxu0 0.0
        %1039 = vmatprep.subr.mxu0 0.0
        %1040 = vmatpush1.msra.mxu0 0.0
        %1041 = vmatprep.subr.mxu0 0.0
        %1042 = vmatpush1.msra.mxu0 0.0
        %1043 = vmatprep.subr.mxu0 0.0
        %1044 = vmatpush1.msra.mxu0 0.0
        %1045 = vmatprep.subr.mxu0 0.0
        %1046 = vmatpush1.msra.mxu0 0.0
        %1047 = vmatprep.subr.mxu0 0.0
        %1048 = vmatpush1.msra.mxu0 0.0
        %1049 = vmatprep.subr.mxu0 0.0
        %1050 = vmatpush1.msra.mxu0 0.0
        %1051 = vmatprep.subr.mxu0 0.0
        %1052 = vmatpush1.msra.mxu0 0.0
        %1053 = vmatprep.subr.mxu0 0.0
        %1054 = vmatpush1.msra.mxu0 0.0
        %1055 = vmatprep.subr.mxu0 0.0
        %1056 = vmatpush1.msra.mxu0 0.0
        %1057 = vmatprep.subr.mxu0 0.0
        %1058 = vmatpush1.msra.mxu0 0.0
        %1059 = vmatprep.subr.mxu0 0.0
        %1060 = vmatpush1.msra.mxu0 0.0
        %1061 = vmatprep.subr.mxu0 0.0
        %1062 = vmatpush1.msra.mxu0 0.0
        %1063 = vmatprep.subr.mxu0 0.0
        %1064 = vmatpush1.msra.mxu0 0.0
        %1065 = vmatprep.subr.mxu0 0.0
        %1066 = vmatpush1.msra.mxu0 0.0
        %1067 = vmatprep.subr.mxu0 0.0
        %1068 = vmatpush1.msra.mxu0 0.0
        %1069 = vmatprep.subr.mxu0 0.0
        %1070 = vmatpush1.msra.mxu0 0.0
        %1071 = vmatprep.subr.mxu0 0.0
        %1072 = vmatpush1.msra.mxu0 0.0
        %1073 = vmatprep.subr.mxu0 0.0
        %1074 = vmatpush1.msra.mxu0 0.0
        %1075 = vmatprep.subr.mxu0 0.0
        %1076 = vmatpush1.msra.mxu0 0.0
        %1077 = vmatprep.subr.mxu0 0.0
        %1078 = vmatpush1.msra.mxu0 0.0
        %1079 = vmatprep.subr.mxu0 0.0
        %1080 = vmatpush1.msra.mxu0 0.0
        %1081 = vmatprep.subr.mxu0 0.0
        %1082 = vmatpush1.msra.mxu0 0.0
        %1083 = vmatprep.subr.mxu0 0.0
        %1084 = vmatpush1.msra.mxu0 0.0
        %1085 = vmatprep.subr.mxu0 0.0
        %1086 = vmatpush1.msra.mxu0 0.0
        %1087 = vmatprep.subr.mxu0 0.0
        %1088 = vmatpush1.msra.mxu0 0.0
        %1089 = vmatprep.subr.mxu0 0.0
        %1090 = vmatpush1.msra.mxu0 0.0
        %1091 = vmatprep.subr.mxu0 0.0
        %1092 = vmatpush1.msra.mxu0 0.0
        %1093 = vmatprep.subr.mxu0 0.0
        %1094 = vmatpush1.msra.mxu0 0.0
        %1095 = vmatprep.mubr.f32.mxu0 0.0
        %1096 = vmatmul.mubr.f32.gmra.mrb[0].mxu0 %v1029
        %v1097 = vpop.f32.mrb[0].mxu0
        %v1098 = vadd.f32 0.0, %v1097
        %v1099 = vpop.f32.mrb[0].mxu0
        %1100 = vdwg.mxu0
        %v1101 = vmax.f32 %v1098, 0.0
        %v1103 = vsel %vm450, %v854, 0
        %1105 = vmatprep.subr.mxu0 0.0
        %1106 = vmatpush1.msra.mxu0 %v935
        %1107 = vmatprep.subr.mxu0 0.0
        %1108 = vmatpush1.msra.mxu0 0.0
        %1109 = vmatprep.subr.mxu0 0.0
        %1110 = vmatpush1.msra.mxu0 0.0
        %1111 = vmatprep.subr.mxu0 0.0
        %1112 = vmatpush1.msra.mxu0 0.0
        %1113 = vmatprep.subr.mxu0 0.0
        %1114 = vmatpush1.msra.mxu0 0.0
        %1115 = vmatprep.subr.mxu0 0.0
        %1116 = vmatpush1.msra.mxu0 0.0
        %1117 = vmatprep.subr.mxu0 0.0
        %1118 = vmatpush1.msra.mxu0 0.0
        %1119 = vmatprep.subr.mxu0 0.0
        %1120 = vmatpush1.msra.mxu0 0.0
        %1121 = vmatprep.subr.mxu0 0.0
        %1122 = vmatpush1.msra.mxu0 0.0
        %1123 = vmatprep.subr.mxu0 0.0
        %1124 = vmatpush1.msra.mxu0 0.0
        %1125 = vmatprep.subr.mxu0 0.0
        %1126 = vmatpush1.msra.mxu0 0.0
        %1127 = vmatprep.subr.mxu0 0.0
        %1128 = vmatpush1.msra.mxu0 0.0
        %1129 = vmatprep.subr.mxu0 0.0
        %1130 = vmatpush1.msra.mxu0 0.0
        %1131 = vmatprep.subr.mxu0 0.0
        %1132 = vmatpush1.msra.mxu0 0.0
        %1133 = vmatprep.subr.mxu0 0.0
        %1134 = vmatpush1.msra.mxu0 0.0
        %1135 = vmatprep.subr.mxu0 0.0
        %1136 = vmatpush1.msra.mxu0 0.0
        %1137 = vmatprep.subr.mxu0 0.0
        %1138 = vmatpush1.msra.mxu0 0.0
        %1139 = vmatprep.subr.mxu0 0.0
        %1140 = vmatpush1.msra.mxu0 0.0
        %1141 = vmatprep.subr.mxu0 0.0
        %1142 = vmatpush1.msra.mxu0 0.0
        %1143 = vmatprep.subr.mxu0 0.0
        %1144 = vmatpush1.msra.mxu0 0.0
        %1145 = vmatprep.subr.mxu0 0.0
        %1146 = vmatpush1.msra.mxu0 0.0
        %1147 = vmatprep.subr.mxu0 0.0
        %1148 = vmatpush1.msra.mxu0 0.0
        %1149 = vmatprep.subr.mxu0 0.0
        %1150 = vmatpush1.msra.mxu0 0.0
        %1151 = vmatprep.subr.mxu0 0.0
        %1152 = vmatpush1.msra.mxu0 0.0
        %1153 = vmatprep.subr.mxu0 0.0
        %1154 = vmatpush1.msra.mxu0 0.0
        %1155 = vmatprep.subr.mxu0 0.0
        %1156 = vmatpush1.msra.mxu0 0.0
        %1157 = vmatprep.subr.mxu0 0.0
        %1158 = vmatpush1.msra.mxu0 0.0
        %1159 = vmatprep.subr.mxu0 0.0
        %1160 = vmatpush1.msra.mxu0 0.0
        %1161 = vmatprep.subr.mxu0 0.0
        %1162 = vmatpush1.msra.mxu0 0.0
        %1163 = vmatprep.subr.mxu0 0.0
        %1164 = vmatpush1.msra.mxu0 0.0
        %1165 = vmatprep.subr.mxu0 0.0
        %1166 = vmatpush1.msra.mxu0 0.0
        %1167 = vmatprep.subr.mxu0 0.0
        %1168 = vmatpush1.msra.mxu0 0.0
        %1169 = vmatprep.mubr.f32.mxu0 0.0
        %1170 = vmatmul.mubr.f32.gmra.mrb[0].mxu0 %v1103
        %v1171 = vpop.f32.mrb[0].mxu0
        %v1172 = vadd.f32 0.0, %v1171
        %v1173 = vpop.f32.mrb[0].mxu0
        %1174 = vdwg.mxu0
        %v1175 = vadd.f32 %v1101, %v1172
        %s1176 = sld [smem:[#allocation2]]
        %v1177 = vstv %s1176
        %v1178 = vmul.f32 %v1177, %v1175
        %v1179 = vadd.f32 %v1178, 0.0
        %s1180 = sld [smem:[#allocation2 + $0x80]]
        %v1181 = vstv %s1180
        %v1182 = vmul.f32 %v1181, %v1175
        %v1183 = vadd.f32 %v1182, 0.0
        %s1184 = sld [smem:[#allocation2 + $0x100]]
        %v1185 = vstv %s1184
        %v1186 = vmul.f32 %v1185, %v1175
        %v1187 = vadd.f32 %v1186, 0.0
        %s1188 = scalar_lea.vmem %s6, 8
        %v1189 = vld [vmem:[%s1188] sm:$0xff]
        %v1191 = vsel %vm450, %v1189, 0
        %1193 = vmatprep.subr.mxu0 0.0
        %1194 = vmatpush1.msra.mxu0 %v847
        %1195 = vmatprep.subr.mxu0 0.0
        %1196 = vmatpush1.msra.mxu0 0.0
        %1197 = vmatprep.subr.mxu0 0.0
        %1198 = vmatpush1.msra.mxu0 0.0
        %1199 = vmatprep.subr.mxu0 0.0
        %1200 = vmatpush1.msra.mxu0 0.0
        %1201 = vmatprep.subr.mxu0 0.0
        %1202 = vmatpush1.msra.mxu0 0.0
        %1203 = vmatprep.subr.mxu0 0.0
        %1204 = vmatpush1.msra.mxu0 0.0
        %1205 = vmatprep.subr.mxu0 0.0
        %1206 = vmatpush1.msra.mxu0 0.0
        %1207 = vmatprep.subr.mxu0 0.0
        %1208 = vmatpush1.msra.mxu0 0.0
        %1209 = vmatprep.subr.mxu0 0.0
        %1210 = vmatpush1.msra.mxu0 0.0
        %1211 = vmatprep.subr.mxu0 0.0
        %1212 = vmatpush1.msra.mxu0 0.0
        %1213 = vmatprep.subr.mxu0 0.0
        %1214 = vmatpush1.msra.mxu0 0.0
        %1215 = vmatprep.subr.mxu0 0.0
        %1216 = vmatpush1.msra.mxu0 0.0
        %1217 = vmatprep.subr.mxu0 0.0
        %1218 = vmatpush1.msra.mxu0 0.0
        %1219 = vmatprep.subr.mxu0 0.0
        %1220 = vmatpush1.msra.mxu0 0.0
        %1221 = vmatprep.subr.mxu0 0.0
        %1222 = vmatpush1.msra.mxu0 0.0
        %1223 = vmatprep.subr.mxu0 0.0
        %1224 = vmatpush1.msra.mxu0 0.0
        %1225 = vmatprep.subr.mxu0 0.0
        %1226 = vmatpush1.msra.mxu0 0.0
        %1227 = vmatprep.subr.mxu0 0.0
        %1228 = vmatpush1.msra.mxu0 0.0
        %1229 = vmatprep.subr.mxu0 0.0
        %1230 = vmatpush1.msra.mxu0 0.0
        %1231 = vmatprep.subr.mxu0 0.0
        %1232 = vmatpush1.msra.mxu0 0.0
        %1233 = vmatprep.subr.mxu0 0.0
        %1234 = vmatpush1.msra.mxu0 0.0
        %1235 = vmatprep.subr.mxu0 0.0
        %1236 = vmatpush1.msra.mxu0 0.0
        %1237 = vmatprep.subr.mxu0 0.0
        %1238 = vmatpush1.msra.mxu0 0.0
        %1239 = vmatprep.subr.mxu0 0.0
        %1240 = vmatpush1.msra.mxu0 0.0
        %1241 = vmatprep.subr.mxu0 0.0
        %1242 = vmatpush1.msra.mxu0 0.0
        %1243 = vmatprep.subr.mxu0 0.0
        %1244 = vmatpush1.msra.mxu0 0.0
        %1245 = vmatprep.subr.mxu0 0.0
        %1246 = vmatpush1.msra.mxu0 0.0
        %1247 = vmatprep.subr.mxu0 0.0
        %1248 = vmatpush1.msra.mxu0 0.0
        %1249 = vmatprep.subr.mxu0 0.0
        %1250 = vmatpush1.msra.mxu0 0.0
        %1251 = vmatprep.subr.mxu0 0.0
        %1252 = vmatpush1.msra.mxu0 0.0
        %1253 = vmatprep.subr.mxu0 0.0
        %1254 = vmatpush1.msra.mxu0 0.0
        %1255 = vmatprep.subr.mxu0 0.0
        %1256 = vmatpush1.msra.mxu0 0.0
        %1257 = vmatprep.mubr.f32.mxu0 0.0
        %1258 = vmatmul.mubr.f32.gmra.mrb[0].mxu0 %v1191
        %v1259 = vpop.f32.mrb[0].mxu0
        %v1260 = vadd.f32 0.0, %v1259
        %v1261 = vpop.f32.mrb[0].mxu0
        %1262 = vdwg.mxu0
        %s1263 = scalar_lea.vmem %s7, 8
        %v1264 = vld [vmem:[%s1263] sm:$0xff]
        %v1266 = vsel %vm450, %v1260, 0
        %1268 = vmatprep.subr.mxu0 0.0
        %1269 = vmatpush1.msra.mxu0 %v1264
        %1270 = vmatprep.subr.mxu0 0.0
        %1271 = vmatpush1.msra.mxu0 0.0
        %1272 = vmatprep.subr.mxu0 0.0
        %1273 = vmatpush1.msra.mxu0 0.0
        %1274 = vmatprep.subr.mxu0 0.0
        %1275 = vmatpush1.msra.mxu0 0.0
        %1276 = vmatprep.subr.mxu0 0.0
        %1277 = vmatpush1.msra.mxu0 0.0
        %1278 = vmatprep.subr.mxu0 0.0
        %1279 = vmatpush1.msra.mxu0 0.0
        %1280 = vmatprep.subr.mxu0 0.0
        %1281 = vmatpush1.msra.mxu0 0.0
        %1282 = vmatprep.subr.mxu0 0.0
        %1283 = vmatpush1.msra.mxu0 0.0
        %1284 = vmatprep.subr.mxu0 0.0
        %1285 = vmatpush1.msra.mxu0 0.0
        %1286 = vmatprep.subr.mxu0 0.0
        %1287 = vmatpush1.msra.mxu0 0.0
        %1288 = vmatprep.subr.mxu0 0.0
        %1289 = vmatpush1.msra.mxu0 0.0
        %1290 = vmatprep.subr.mxu0 0.0
        %1291 = vmatpush1.msra.mxu0 0.0
        %1292 = vmatprep.subr.mxu0 0.0
        %1293 = vmatpush1.msra.mxu0 0.0
        %1294 = vmatprep.subr.mxu0 0.0
        %1295 = vmatpush1.msra.mxu0 0.0
        %1296 = vmatprep.subr.mxu0 0.0
        %1297 = vmatpush1.msra.mxu0 0.0
        %1298 = vmatprep.subr.mxu0 0.0
        %1299 = vmatpush1.msra.mxu0 0.0
        %1300 = vmatprep.subr.mxu0 0.0
        %1301 = vmatpush1.msra.mxu0 0.0
        %1302 = vmatprep.subr.mxu0 0.0
        %1303 = vmatpush1.msra.mxu0 0.0
        %1304 = vmatprep.subr.mxu0 0.0
        %1305 = vmatpush1.msra.mxu0 0.0
        %1306 = vmatprep.subr.mxu0 0.0
        %1307 = vmatpush1.msra.mxu0 0.0
        %1308 = vmatprep.subr.mxu0 0.0
        %1309 = vmatpush1.msra.mxu0 0.0
        %1310 = vmatprep.subr.mxu0 0.0
        %1311 = vmatpush1.msra.mxu0 0.0
        %1312 = vmatprep.subr.mxu0 0.0
        %1313 = vmatpush1.msra.mxu0 0.0
        %1314 = vmatprep.subr.mxu0 0.0
        %1315 = vmatpush1.msra.mxu0 0.0
        %1316 = vmatprep.subr.mxu0 0.0
        %1317 = vmatpush1.msra.mxu0 0.0
        %1318 = vmatprep.subr.mxu0 0.0
        %1319 = vmatpush1.msra.mxu0 0.0
        %1320 = vmatprep.subr.mxu0 0.0
        %1321 = vmatpush1.msra.mxu0 0.0
        %1322 = vmatprep.subr.mxu0 0.0
        %1323 = vmatpush1.msra.mxu0 0.0
        %1324 = vmatprep.subr.mxu0 0.0
        %1325 = vmatpush1.msra.mxu0 0.0
        %1326 = vmatprep.subr.mxu0 0.0
        %1327 = vmatpush1.msra.mxu0 0.0
        %1328 = vmatprep.subr.mxu0 0.0
        %1329 = vmatpush1.msra.mxu0 0.0
        %1330 = vmatprep.subr.mxu0 0.0
        %1331 = vmatpush1.msra.mxu0 0.0
        %1332 = vmatprep.mubr.f32.mxu0 0.0
        %1333 = vmatmul.mubr.f32.gmra.mrb[0].mxu0 %v1266
        %v1334 = vpop.f32.mrb[0].mxu0
        %v1335 = vadd.f32 0.0, %v1334
        %v1336 = vpop.f32.mrb[0].mxu0
        %1337 = vdwg.mxu0
        %v1338 = vmax.f32 %v1335, 0.0
        %1339 = vmatprep.subr.mxu0 0.0
        %1340 = vmatpush1.msra.mxu0 %v940
        %1341 = vmatprep.subr.mxu0 0.0
        %1342 = vmatpush1.msra.mxu0 0.0
        %1343 = vmatprep.subr.mxu0 0.0
        %1344 = vmatpush1.msra.mxu0 0.0
        %1345 = vmatprep.subr.mxu0 0.0
        %1346 = vmatpush1.msra.mxu0 0.0
        %1347 = vmatprep.subr.mxu0 0.0
        %1348 = vmatpush1.msra.mxu0 0.0
        %1349 = vmatprep.subr.mxu0 0.0
        %1350 = vmatpush1.msra.mxu0 0.0
        %1351 = vmatprep.subr.mxu0 0.0
        %1352 = vmatpush1.msra.mxu0 0.0
        %1353 = vmatprep.subr.mxu0 0.0
        %1354 = vmatpush1.msra.mxu0 0.0
        %1355 = vmatprep.subr.mxu0 0.0
        %1356 = vmatpush1.msra.mxu0 0.0
        %1357 = vmatprep.subr.mxu0 0.0
        %1358 = vmatpush1.msra.mxu0 0.0
        %1359 = vmatprep.subr.mxu0 0.0
        %1360 = vmatpush1.msra.mxu0 0.0
        %1361 = vmatprep.subr.mxu0 0.0
        %1362 = vmatpush1.msra.mxu0 0.0
        %1363 = vmatprep.subr.mxu0 0.0
        %1364 = vmatpush1.msra.mxu0 0.0
        %1365 = vmatprep.subr.mxu0 0.0
        %1366 = vmatpush1.msra.mxu0 0.0
        %1367 = vmatprep.subr.mxu0 0.0
        %1368 = vmatpush1.msra.mxu0 0.0
        %1369 = vmatprep.subr.mxu0 0.0
        %1370 = vmatpush1.msra.mxu0 0.0
        %1371 = vmatprep.subr.mxu0 0.0
        %1372 = vmatpush1.msra.mxu0 0.0
        %1373 = vmatprep.subr.mxu0 0.0
        %1374 = vmatpush1.msra.mxu0 0.0
        %1375 = vmatprep.subr.mxu0 0.0
        %1376 = vmatpush1.msra.mxu0 0.0
        %1377 = vmatprep.subr.mxu0 0.0
        %1378 = vmatpush1.msra.mxu0 0.0
        %1379 = vmatprep.subr.mxu0 0.0
        %1380 = vmatpush1.msra.mxu0 0.0
        %1381 = vmatprep.subr.mxu0 0.0
        %1382 = vmatpush1.msra.mxu0 0.0
        %1383 = vmatprep.subr.mxu0 0.0
        %1384 = vmatpush1.msra.mxu0 0.0
        %1385 = vmatprep.subr.mxu0 0.0
        %1386 = vmatpush1.msra.mxu0 0.0
        %1387 = vmatprep.subr.mxu0 0.0
        %1388 = vmatpush1.msra.mxu0 0.0
        %1389 = vmatprep.subr.mxu0 0.0
        %1390 = vmatpush1.msra.mxu0 0.0
        %1391 = vmatprep.subr.mxu0 0.0
        %1392 = vmatpush1.msra.mxu0 0.0
        %1393 = vmatprep.subr.mxu0 0.0
        %1394 = vmatpush1.msra.mxu0 0.0
        %1395 = vmatprep.subr.mxu0 0.0
        %1396 = vmatpush1.msra.mxu0 0.0
        %1397 = vmatprep.subr.mxu0 0.0
        %1398 = vmatpush1.msra.mxu0 0.0
        %1399 = vmatprep.subr.mxu0 0.0
        %1400 = vmatpush1.msra.mxu0 0.0
        %1401 = vmatprep.subr.mxu0 0.0
        %1402 = vmatpush1.msra.mxu0 0.0
        %1403 = vmatprep.mubr.f32.mxu0 0.0
        %1404 = vmatmul.mubr.f32.gmra.mrb[0].mxu0 %v1103
        %v1405 = vpop.f32.mrb[0].mxu0
        %v1406 = vadd.f32 0.0, %v1405
        %v1407 = vpop.f32.mrb[0].mxu0
        %1408 = vdwg.mxu0
        %v1409 = vadd.f32 %v1338, %v1406
        %s1410 = sld [smem:[#allocation2 + $0x1]]
        %v1411 = vstv %s1410
        %v1412 = vmul.f32 %v1411, %v1409
        %v1413 = vadd.f32 %v1179, %v1412
        %s1414 = sld [smem:[#allocation2 + $0x81]]
        %v1415 = vstv %s1414
        %v1416 = vmul.f32 %v1415, %v1409
        %v1417 = vadd.f32 %v1183, %v1416
        %s1418 = sld [smem:[#allocation2 + $0x101]]
        %v1419 = vstv %s1418
        %v1420 = vmul.f32 %v1419, %v1409
        %v1421 = vadd.f32 %v1187, %v1420
        %s1422 = scalar_lea.vmem %s6, 16
        %v1423 = vld [vmem:[%s1422] sm:$0xff]
        %v1425 = vsel %vm450, %v1423, 0
        %1427 = vmatprep.subr.mxu0 0.0
        %1428 = vmatpush1.msra.mxu0 %v848
        %1429 = vmatprep.subr.mxu0 0.0
        %1430 = vmatpush1.msra.mxu0 0.0
        %1431 = vmatprep.subr.mxu0 0.0
        %1432 = vmatpush1.msra.mxu0 0.0
        %1433 = vmatprep.subr.mxu0 0.0
        %1434 = vmatpush1.msra.mxu0 0.0
        %1435 = vmatprep.subr.mxu0 0.0
        %1436 = vmatpush1.msra.mxu0 0.0
        %1437 = vmatprep.subr.mxu0 0.0
        %1438 = vmatpush1.msra.mxu0 0.0
        %1439 = vmatprep.subr.mxu0 0.0
        %1440 = vmatpush1.msra.mxu0 0.0
        %1441 = vmatprep.subr.mxu0 0.0
        %1442 = vmatpush1.msra.mxu0 0.0
        %1443 = vmatprep.subr.mxu0 0.0
        %1444 = vmatpush1.msra.mxu0 0.0
        %1445 = vmatprep.subr.mxu0 0.0
        %1446 = vmatpush1.msra.mxu0 0.0
        %1447 = vmatprep.subr.mxu0 0.0
        %1448 = vmatpush1.msra.mxu0 0.0
        %1449 = vmatprep.subr.mxu0 0.0
        %1450 = vmatpush1.msra.mxu0 0.0
        %1451 = vmatprep.subr.mxu0 0.0
        %1452 = vmatpush1.msra.mxu0 0.0
        %1453 = vmatprep.subr.mxu0 0.0
        %1454 = vmatpush1.msra.mxu0 0.0
        %1455 = vmatprep.subr.mxu0 0.0
        %1456 = vmatpush1.msra.mxu0 0.0
        %1457 = vmatprep.subr.mxu0 0.0
        %1458 = vmatpush1.msra.mxu0 0.0
        %1459 = vmatprep.subr.mxu0 0.0
        %1460 = vmatpush1.msra.mxu0 0.0
        %1461 = vmatprep.subr.mxu0 0.0
        %1462 = vmatpush1.msra.mxu0 0.0
        %1463 = vmatprep.subr.mxu0 0.0
        %1464 = vmatpush1.msra.mxu0 0.0
        %1465 = vmatprep.subr.mxu0 0.0
        %1466 = vmatpush1.msra.mxu0 0.0
        %1467 = vmatprep.subr.mxu0 0.0
        %1468 = vmatpush1.msra.mxu0 0.0
        %1469 = vmatprep.subr.mxu0 0.0
        %1470 = vmatpush1.msra.mxu0 0.0
        %1471 = vmatprep.subr.mxu0 0.0
        %1472 = vmatpush1.msra.mxu0 0.0
        %1473 = vmatprep.subr.mxu0 0.0
        %1474 = vmatpush1.msra.mxu0 0.0
        %1475 = vmatprep.subr.mxu0 0.0
        %1476 = vmatpush1.msra.mxu0 0.0
        %1477 = vmatprep.subr.mxu0 0.0
        %1478 = vmatpush1.msra.mxu0 0.0
        %1479 = vmatprep.subr.mxu0 0.0
        %1480 = vmatpush1.msra.mxu0 0.0
        %1481 = vmatprep.subr.mxu0 0.0
        %1482 = vmatpush1.msra.mxu0 0.0
        %1483 = vmatprep.subr.mxu0 0.0
        %1484 = vmatpush1.msra.mxu0 0.0
        %1485 = vmatprep.subr.mxu0 0.0
        %1486 = vmatpush1.msra.mxu0 0.0
        %1487 = vmatprep.subr.mxu0 0.0
        %1488 = vmatpush1.msra.mxu0 0.0
        %1489 = vmatprep.subr.mxu0 0.0
        %1490 = vmatpush1.msra.mxu0 0.0
        %1491 = vmatprep.mubr.f32.mxu0 0.0
        %1492 = vmatmul.mubr.f32.gmra.mrb[0].mxu0 %v1425
        %v1493 = vpop.f32.mrb[0].mxu0
        %v1494 = vadd.f32 0.0, %v1493
        %v1495 = vpop.f32.mrb[0].mxu0
        %1496 = vdwg.mxu0
        %s1497 = scalar_lea.vmem %s7, 16
        %v1498 = vld [vmem:[%s1497] sm:$0xff]
        %v1500 = vsel %vm450, %v1494, 0
        %1502 = vmatprep.subr.mxu0 0.0
        %1503 = vmatpush1.msra.mxu0 %v1498
        %1504 = vmatprep.subr.mxu0 0.0
        %1505 = vmatpush1.msra.mxu0 0.0
        %1506 = vmatprep.subr.mxu0 0.0
        %1507 = vmatpush1.msra.mxu0 0.0
        %1508 = vmatprep.subr.mxu0 0.0
        %1509 = vmatpush1.msra.mxu0 0.0
        %1510 = vmatprep.subr.mxu0 0.0
        %1511 = vmatpush1.msra.mxu0 0.0
        %1512 = vmatprep.subr.mxu0 0.0
        %1513 = vmatpush1.msra.mxu0 0.0
        %1514 = vmatprep.subr.mxu0 0.0
        %1515 = vmatpush1.msra.mxu0 0.0
        %1516 = vmatprep.subr.mxu0 0.0
        %1517 = vmatpush1.msra.mxu0 0.0
        %1518 = vmatprep.subr.mxu0 0.0
        %1519 = vmatpush1.msra.mxu0 0.0
        %1520 = vmatprep.subr.mxu0 0.0
        %1521 = vmatpush1.msra.mxu0 0.0
        %1522 = vmatprep.subr.mxu0 0.0
        %1523 = vmatpush1.msra.mxu0 0.0
        %1524 = vmatprep.subr.mxu0 0.0
        %1525 = vmatpush1.msra.mxu0 0.0
        %1526 = vmatprep.subr.mxu0 0.0
        %1527 = vmatpush1.msra.mxu0 0.0
        %1528 = vmatprep.subr.mxu0 0.0
        %1529 = vmatpush1.msra.mxu0 0.0
        %1530 = vmatprep.subr.mxu0 0.0
        %1531 = vmatpush1.msra.mxu0 0.0
        %1532 = vmatprep.subr.mxu0 0.0
        %1533 = vmatpush1.msra.mxu0 0.0
        %1534 = vmatprep.subr.mxu0 0.0
        %1535 = vmatpush1.msra.mxu0 0.0
        %1536 = vmatprep.subr.mxu0 0.0
        %1537 = vmatpush1.msra.mxu0 0.0
        %1538 = vmatprep.subr.mxu0 0.0
        %1539 = vmatpush1.msra.mxu0 0.0
        %1540 = vmatprep.subr.mxu0 0.0
        %1541 = vmatpush1.msra.mxu0 0.0
        %1542 = vmatprep.subr.mxu0 0.0
        %1543 = vmatpush1.msra.mxu0 0.0
        %1544 = vmatprep.subr.mxu0 0.0
        %1545 = vmatpush1.msra.mxu0 0.0
        %1546 = vmatprep.subr.mxu0 0.0
        %1547 = vmatpush1.msra.mxu0 0.0
        %1548 = vmatprep.subr.mxu0 0.0
        %1549 = vmatpush1.msra.mxu0 0.0
        %1550 = vmatprep.subr.mxu0 0.0
        %1551 = vmatpush1.msra.mxu0 0.0
        %1552 = vmatprep.subr.mxu0 0.0
        %1553 = vmatpush1.msra.mxu0 0.0
        %1554 = vmatprep.subr.mxu0 0.0
        %1555 = vmatpush1.msra.mxu0 0.0
        %1556 = vmatprep.subr.mxu0 0.0
        %1557 = vmatpush1.msra.mxu0 0.0
        %1558 = vmatprep.subr.mxu0 0.0
        %1559 = vmatpush1.msra.mxu0 0.0
        %1560 = vmatprep.subr.mxu0 0.0
        %1561 = vmatpush1.msra.mxu0 0.0
        %1562 = vmatprep.subr.mxu0 0.0
        %1563 = vmatpush1.msra.mxu0 0.0
        %1564 = vmatprep.subr.mxu0 0.0
        %1565 = vmatpush1.msra.mxu0 0.0
        %1566 = vmatprep.mubr.f32.mxu0 0.0
        %1567 = vmatmul.mubr.f32.gmra.mrb[0].mxu0 %v1500
        %v1568 = vpop.f32.mrb[0].mxu0
        %v1569 = vadd.f32 0.0, %v1568
        %v1570 = vpop.f32.mrb[0].mxu0
        %1571 = vdwg.mxu0
        %v1572 = vmax.f32 %v1569, 0.0
        %1573 = vmatprep.subr.mxu0 0.0
        %1574 = vmatpush1.msra.mxu0 %v945
        %1575 = vmatprep.subr.mxu0 0.0
        %1576 = vmatpush1.msra.mxu0 0.0
        %1577 = vmatprep.subr.mxu0 0.0
        %1578 = vmatpush1.msra.mxu0 0.0
        %1579 = vmatprep.subr.mxu0 0.0
        %1580 = vmatpush1.msra.mxu0 0.0
        %1581 = vmatprep.subr.mxu0 0.0
        %1582 = vmatpush1.msra.mxu0 0.0
        %1583 = vmatprep.subr.mxu0 0.0
        %1584 = vmatpush1.msra.mxu0 0.0
        %1585 = vmatprep.subr.mxu0 0.0
        %1586 = vmatpush1.msra.mxu0 0.0
        %1587 = vmatprep.subr.mxu0 0.0
        %1588 = vmatpush1.msra.mxu0 0.0
        %1589 = vmatprep.subr.mxu0 0.0
        %1590 = vmatpush1.msra.mxu0 0.0
        %1591 = vmatprep.subr.mxu0 0.0
        %1592 = vmatpush1.msra.mxu0 0.0
        %1593 = vmatprep.subr.mxu0 0.0
        %1594 = vmatpush1.msra.mxu0 0.0
        %1595 = vmatprep.subr.mxu0 0.0
        %1596 = vmatpush1.msra.mxu0 0.0
        %1597 = vmatprep.subr.mxu0 0.0
        %1598 = vmatpush1.msra.mxu0 0.0
        %1599 = vmatprep.subr.mxu0 0.0
        %1600 = vmatpush1.msra.mxu0 0.0
        %1601 = vmatprep.subr.mxu0 0.0
        %1602 = vmatpush1.msra.mxu0 0.0
        %1603 = vmatprep.subr.mxu0 0.0
        %1604 = vmatpush1.msra.mxu0 0.0
        %1605 = vmatprep.subr.mxu0 0.0
        %1606 = vmatpush1.msra.mxu0 0.0
        %1607 = vmatprep.subr.mxu0 0.0
        %1608 = vmatpush1.msra.mxu0 0.0
        %1609 = vmatprep.subr.mxu0 0.0
        %1610 = vmatpush1.msra.mxu0 0.0
        %1611 = vmatprep.subr.mxu0 0.0
        %1612 = vmatpush1.msra.mxu0 0.0
        %1613 = vmatprep.subr.mxu0 0.0
        %1614 = vmatpush1.msra.mxu0 0.0
        %1615 = vmatprep.subr.mxu0 0.0
        %1616 = vmatpush1.msra.mxu0 0.0
        %1617 = vmatprep.subr.mxu0 0.0
        %1618 = vmatpush1.msra.mxu0 0.0
        %1619 = vmatprep.subr.mxu0 0.0
        %1620 = vmatpush1.msra.mxu0 0.0
        %1621 = vmatprep.subr.mxu0 0.0
        %1622 = vmatpush1.msra.mxu0 0.0
        %1623 = vmatprep.subr.mxu0 0.0
        %1624 = vmatpush1.msra.mxu0 0.0
        %1625 = vmatprep.subr.mxu0 0.0
        %1626 = vmatpush1.msra.mxu0 0.0
        %1627 = vmatprep.subr.mxu0 0.0
        %1628 = vmatpush1.msra.mxu0 0.0
        %1629 = vmatprep.subr.mxu0 0.0
        %1630 = vmatpush1.msra.mxu0 0.0
        %1631 = vmatprep.subr.mxu0 0.0
        %1632 = vmatpush1.msra.mxu0 0.0
        %1633 = vmatprep.subr.mxu0 0.0
        %1634 = vmatpush1.msra.mxu0 0.0
        %1635 = vmatprep.subr.mxu0 0.0
        %1636 = vmatpush1.msra.mxu0 0.0
        %1637 = vmatprep.mubr.f32.mxu0 0.0
        %1638 = vmatmul.mubr.f32.gmra.mrb[0].mxu0 %v1103
        %v1639 = vpop.f32.mrb[0].mxu0
        %v1640 = vadd.f32 0.0, %v1639
        %v1641 = vpop.f32.mrb[0].mxu0
        %1642 = vdwg.mxu0
        %v1643 = vadd.f32 %v1572, %v1640
        %s1644 = sld [smem:[#allocation2 + $0x2]]
        %v1645 = vstv %s1644
        %v1646 = vmul.f32 %v1645, %v1643
        %v1647 = vadd.f32 %v1413, %v1646
        %s1648 = sld [smem:[#allocation2 + $0x82]]
        %v1649 = vstv %s1648
        %v1650 = vmul.f32 %v1649, %v1643
        %v1651 = vadd.f32 %v1417, %v1650
        %s1652 = sld [smem:[#allocation2 + $0x102]]
        %v1653 = vstv %s1652
        %v1654 = vmul.f32 %v1653, %v1643
        %v1655 = vadd.f32 %v1421, %v1654
        %s1656 = scalar_lea.vmem %s6, 24
        %v1657 = vld [vmem:[%s1656] sm:$0xff]
        %v1659 = vsel %vm450, %v1657, 0
        %1661 = vmatprep.subr.mxu0 0.0
        %1662 = vmatpush1.msra.mxu0 %v849
        %1663 = vmatprep.subr.mxu0 0.0
        %1664 = vmatpush1.msra.mxu0 0.0
        %1665 = vmatprep.subr.mxu0 0.0
        %1666 = vmatpush1.msra.mxu0 0.0
        %1667 = vmatprep.subr.mxu0 0.0
        %1668 = vmatpush1.msra.mxu0 0.0
        %1669 = vmatprep.subr.mxu0 0.0
        %1670 = vmatpush1.msra.mxu0 0.0
        %1671 = vmatprep.subr.mxu0 0.0
        %1672 = vmatpush1.msra.mxu0 0.0
        %1673 = vmatprep.subr.mxu0 0.0
        %1674 = vmatpush1.msra.mxu0 0.0
        %1675 = vmatprep.subr.mxu0 0.0
        %1676 = vmatpush1.msra.mxu0 0.0
        %1677 = vmatprep.subr.mxu0 0.0
        %1678 = vmatpush1.msra.mxu0 0.0
        %1679 = vmatprep.subr.mxu0 0.0
        %1680 = vmatpush1.msra.mxu0 0.0
        %1681 = vmatprep.subr.mxu0 0.0
        %1682 = vmatpush1.msra.mxu0 0.0
        %1683 = vmatprep.subr.mxu0 0.0
        %1684 = vmatpush1.msra.mxu0 0.0
        %1685 = vmatprep.subr.mxu0 0.0
        %1686 = vmatpush1.msra.mxu0 0.0
        %1687 = vmatprep.subr.mxu0 0.0
        %1688 = vmatpush1.msra.mxu0 0.0
        %1689 = vmatprep.subr.mxu0 0.0
        %1690 = vmatpush1.msra.mxu0 0.0
        %1691 = vmatprep.subr.mxu0 0.0
        %1692 = vmatpush1.msra.mxu0 0.0
        %1693 = vmatprep.subr.mxu0 0.0
        %1694 = vmatpush1.msra.mxu0 0.0
        %1695 = vmatprep.subr.mxu0 0.0
        %1696 = vmatpush1.msra.mxu0 0.0
        %1697 = vmatprep.subr.mxu0 0.0
        %1698 = vmatpush1.msra.mxu0 0.0
        %1699 = vmatprep.subr.mxu0 0.0
        %1700 = vmatpush1.msra.mxu0 0.0
        %1701 = vmatprep.subr.mxu0 0.0
        %1702 = vmatpush1.msra.mxu0 0.0
        %1703 = vmatprep.subr.mxu0 0.0
        %1704 = vmatpush1.msra.mxu0 0.0
        %1705 = vmatprep.subr.mxu0 0.0
        %1706 = vmatpush1.msra.mxu0 0.0
        %1707 = vmatprep.subr.mxu0 0.0
        %1708 = vmatpush1.msra.mxu0 0.0
        %1709 = vmatprep.subr.mxu0 0.0
        %1710 = vmatpush1.msra.mxu0 0.0
        %1711 = vmatprep.subr.mxu0 0.0
        %1712 = vmatpush1.msra.mxu0 0.0
        %1713 = vmatprep.subr.mxu0 0.0
        %1714 = vmatpush1.msra.mxu0 0.0
        %1715 = vmatprep.subr.mxu0 0.0
        %1716 = vmatpush1.msra.mxu0 0.0
        %1717 = vmatprep.subr.mxu0 0.0
        %1718 = vmatpush1.msra.mxu0 0.0
        %1719 = vmatprep.subr.mxu0 0.0
        %1720 = vmatpush1.msra.mxu0 0.0
        %1721 = vmatprep.subr.mxu0 0.0
        %1722 = vmatpush1.msra.mxu0 0.0
        %1723 = vmatprep.subr.mxu0 0.0
        %1724 = vmatpush1.msra.mxu0 0.0
        %1725 = vmatprep.mubr.f32.mxu0 0.0
        %1726 = vmatmul.mubr.f32.gmra.mrb[0].mxu0 %v1659
        %v1727 = vpop.f32.mrb[0].mxu0
        %v1728 = vadd.f32 0.0, %v1727
        %v1729 = vpop.f32.mrb[0].mxu0
        %1730 = vdwg.mxu0
        %s1731 = scalar_lea.vmem %s7, 24
        %v1732 = vld [vmem:[%s1731] sm:$0xff]
        %v1734 = vsel %vm450, %v1728, 0
        %1736 = vmatprep.subr.mxu0 0.0
        %1737 = vmatpush1.msra.mxu0 %v1732
        %1738 = vmatprep.subr.mxu0 0.0
        %1739 = vmatpush1.msra.mxu0 0.0
        %1740 = vmatprep.subr.mxu0 0.0
        %1741 = vmatpush1.msra.mxu0 0.0
        %1742 = vmatprep.subr.mxu0 0.0
        %1743 = vmatpush1.msra.mxu0 0.0
        %1744 = vmatprep.subr.mxu0 0.0
        %1745 = vmatpush1.msra.mxu0 0.0
        %1746 = vmatprep.subr.mxu0 0.0
        %1747 = vmatpush1.msra.mxu0 0.0
        %1748 = vmatprep.subr.mxu0 0.0
        %1749 = vmatpush1.msra.mxu0 0.0
        %1750 = vmatprep.subr.mxu0 0.0
        %1751 = vmatpush1.msra.mxu0 0.0
        %1752 = vmatprep.subr.mxu0 0.0
        %1753 = vmatpush1.msra.mxu0 0.0
        %1754 = vmatprep.subr.mxu0 0.0
        %1755 = vmatpush1.msra.mxu0 0.0
        %1756 = vmatprep.subr.mxu0 0.0
        %1757 = vmatpush1.msra.mxu0 0.0
        %1758 = vmatprep.subr.mxu0 0.0
        %1759 = vmatpush1.msra.mxu0 0.0
        %1760 = vmatprep.subr.mxu0 0.0
        %1761 = vmatpush1.msra.mxu0 0.0
        %1762 = vmatprep.subr.mxu0 0.0
        %1763 = vmatpush1.msra.mxu0 0.0
        %1764 = vmatprep.subr.mxu0 0.0
        %1765 = vmatpush1.msra.mxu0 0.0
        %1766 = vmatprep.subr.mxu0 0.0
        %1767 = vmatpush1.msra.mxu0 0.0
        %1768 = vmatprep.subr.mxu0 0.0
        %1769 = vmatpush1.msra.mxu0 0.0
        %1770 = vmatprep.subr.mxu0 0.0
        %1771 = vmatpush1.msra.mxu0 0.0
        %1772 = vmatprep.subr.mxu0 0.0
        %1773 = vmatpush1.msra.mxu0 0.0
        %1774 = vmatprep.subr.mxu0 0.0
        %1775 = vmatpush1.msra.mxu0 0.0
        %1776 = vmatprep.subr.mxu0 0.0
        %1777 = vmatpush1.msra.mxu0 0.0
        %1778 = vmatprep.subr.mxu0 0.0
        %1779 = vmatpush1.msra.mxu0 0.0
        %1780 = vmatprep.subr.mxu0 0.0
        %1781 = vmatpush1.msra.mxu0 0.0
        %1782 = vmatprep.subr.mxu0 0.0
        %1783 = vmatpush1.msra.mxu0 0.0
        %1784 = vmatprep.subr.mxu0 0.0
        %1785 = vmatpush1.msra.mxu0 0.0
        %1786 = vmatprep.subr.mxu0 0.0
        %1787 = vmatpush1.msra.mxu0 0.0
        %1788 = vmatprep.subr.mxu0 0.0
        %1789 = vmatpush1.msra.mxu0 0.0
        %1790 = vmatprep.subr.mxu0 0.0
        %1791 = vmatpush1.msra.mxu0 0.0
        %1792 = vmatprep.subr.mxu0 0.0
        %1793 = vmatpush1.msra.mxu0 0.0
        %1794 = vmatprep.subr.mxu0 0.0
        %1795 = vmatpush1.msra.mxu0 0.0
        %1796 = vmatprep.subr.mxu0 0.0
        %1797 = vmatpush1.msra.mxu0 0.0
        %1798 = vmatprep.subr.mxu0 0.0
        %1799 = vmatpush1.msra.mxu0 0.0
        %1800 = vmatprep.mubr.f32.mxu0 0.0
        %1801 = vmatmul.mubr.f32.gmra.mrb[0].mxu0 %v1734
        %v1802 = vpop.f32.mrb[0].mxu0
        %v1803 = vadd.f32 0.0, %v1802
        %v1804 = vpop.f32.mrb[0].mxu0
        %1805 = vdwg.mxu0
        %v1806 = vmax.f32 %v1803, 0.0
        %1807 = vmatprep.subr.mxu0 0.0
        %1808 = vmatpush1.msra.mxu0 %v950
        %1809 = vmatprep.subr.mxu0 0.0
        %1810 = vmatpush1.msra.mxu0 0.0
        %1811 = vmatprep.subr.mxu0 0.0
        %1812 = vmatpush1.msra.mxu0 0.0
        %1813 = vmatprep.subr.mxu0 0.0
        %1814 = vmatpush1.msra.mxu0 0.0
        %1815 = vmatprep.subr.mxu0 0.0
        %1816 = vmatpush1.msra.mxu0 0.0
        %1817 = vmatprep.subr.mxu0 0.0
        %1818 = vmatpush1.msra.mxu0 0.0
        %1819 = vmatprep.subr.mxu0 0.0
        %1820 = vmatpush1.msra.mxu0 0.0
        %1821 = vmatprep.subr.mxu0 0.0
        %1822 = vmatpush1.msra.mxu0 0.0
        %1823 = vmatprep.subr.mxu0 0.0
        %1824 = vmatpush1.msra.mxu0 0.0
        %1825 = vmatprep.subr.mxu0 0.0
        %1826 = vmatpush1.msra.mxu0 0.0
        %1827 = vmatprep.subr.mxu0 0.0
        %1828 = vmatpush1.msra.mxu0 0.0
        %1829 = vmatprep.subr.mxu0 0.0
        %1830 = vmatpush1.msra.mxu0 0.0
        %1831 = vmatprep.subr.mxu0 0.0
        %1832 = vmatpush1.msra.mxu0 0.0
        %1833 = vmatprep.subr.mxu0 0.0
        %1834 = vmatpush1.msra.mxu0 0.0
        %1835 = vmatprep.subr.mxu0 0.0
        %1836 = vmatpush1.msra.mxu0 0.0
        %1837 = vmatprep.subr.mxu0 0.0
        %1838 = vmatpush1.msra.mxu0 0.0
        %1839 = vmatprep.subr.mxu0 0.0
        %1840 = vmatpush1.msra.mxu0 0.0
        %1841 = vmatprep.subr.mxu0 0.0
        %1842 = vmatpush1.msra.mxu0 0.0
        %1843 = vmatprep.subr.mxu0 0.0
        %1844 = vmatpush1.msra.mxu0 0.0
        %1845 = vmatprep.subr.mxu0 0.0
        %1846 = vmatpush1.msra.mxu0 0.0
        %1847 = vmatprep.subr.mxu0 0.0
        %1848 = vmatpush1.msra.mxu0 0.0
        %1849 = vmatprep.subr.mxu0 0.0
        %1850 = vmatpush1.msra.mxu0 0.0
        %1851 = vmatprep.subr.mxu0 0.0
        %1852 = vmatpush1.msra.mxu0 0.0
        %1853 = vmatprep.subr.mxu0 0.0
        %1854 = vmatpush1.msra.mxu0 0.0
        %1855 = vmatprep.subr.mxu0 0.0
        %1856 = vmatpush1.msra.mxu0 0.0
        %1857 = vmatprep.subr.mxu0 0.0
        %1858 = vmatpush1.msra.mxu0 0.0
        %1859 = vmatprep.subr.mxu0 0.0
        %1860 = vmatpush1.msra.mxu0 0.0
        %1861 = vmatprep.subr.mxu0 0.0
        %1862 = vmatpush1.msra.mxu0 0.0
        %1863 = vmatprep.subr.mxu0 0.0
        %1864 = vmatpush1.msra.mxu0 0.0
        %1865 = vmatprep.subr.mxu0 0.0
        %1866 = vmatpush1.msra.mxu0 0.0
        %1867 = vmatprep.subr.mxu0 0.0
        %1868 = vmatpush1.msra.mxu0 0.0
        %1869 = vmatprep.subr.mxu0 0.0
        %1870 = vmatpush1.msra.mxu0 0.0
        %1871 = vmatprep.mubr.f32.mxu0 0.0
        %1872 = vmatmul.mubr.f32.gmra.mrb[0].mxu0 %v1103
        %v1873 = vpop.f32.mrb[0].mxu0
        %v1874 = vadd.f32 0.0, %v1873
        %v1875 = vpop.f32.mrb[0].mxu0
        %1876 = vdwg.mxu0
        %v1877 = vadd.f32 %v1806, %v1874
        %s1878 = sld [smem:[#allocation2 + $0x3]]
        %v1879 = vstv %s1878
        %v1880 = vmul.f32 %v1879, %v1877
        %v1881 = vadd.f32 %v1647, %v1880
        %s1882 = sld [smem:[#allocation2 + $0x83]]
        %v1883 = vstv %s1882
        %v1884 = vmul.f32 %v1883, %v1877
        %v1885 = vadd.f32 %v1651, %v1884
        %s1886 = sld [smem:[#allocation2 + $0x103]]
        %v1887 = vstv %s1886
        %v1888 = vmul.f32 %v1887, %v1877
        %v1889 = vadd.f32 %v1655, %v1888
        %1890 = vst.msk [vmem:[%s423] sm:$0xff] %vm450, %v1881
        %s1891 = scalar_lea.vmem %s423, 8 [#allocation5]
        %1892 = vst.msk [vmem:[%s1891] sm:$0xff] %vm450, %v1885
        %s1893 = scalar_lea.vmem %s423, 16 [#allocation5]
        %1894 = vst.msk [vmem:[%s1893] sm:$0xff] %vm450, %v1889
        %p1895 = scmp.lt.s32.totalorder %s27, 1
        %s1896 = scalar_select %p1895, %s27, 1
        %s1897 = smul.addr %s1896, 4
        %s1898 = smul.addr %s1897, 8
        %s1899 = scalar_lea.vmem %s9, %s1898
        %p1900 = scmp.lt.s32.totalorder %s27, 1
        %s1901 = scalar_select %p1900, %s27, 1
        %s1902 = smul.addr %s1901, 4
        %s1903 = smul.addr %s1902, 8
        %s1904 = scalar_lea.vmem %s10, %s1903
        %s1905 = sand.u32 %s286, 1
        %s1906 = scalar_lea.sflag [#allocation3], %s1905
        %s1907 = sand.u32 %s286, 1
        %s1908 = smul.addr %s1907, 24
        %s1909 = scalar_lea.vmem [#allocation5], %s1908
        // Predicated region
        $region61: #{bsr_forward.1} parent=55 // pred_check
          %p1910 = pneg %p244
        $region62: #{bsr_forward.1} parent=55 // pred_check_branch
          %1912 = sbr.rel (%p1910) target = $region64
        $region63: #{bsr_forward.1} parent=55 // pred_region
          _
        $region64: #{bsr_forward.1} parent=55 // pred_fallthru
          _
        // Predicated region
        $region65: #{bsr_forward.1} parent=55 // pred_check
          %p1913 = pneg %p270
        $region66: #{bsr_forward.1} parent=55 // pred_check_branch
          %1915 = sbr.rel (%p1913) target = $region68
        $region67: #{bsr_forward.1} parent=55 // pred_region
          _
        $region68: #{bsr_forward.1} parent=55 // pred_fallthru
          _
        // Predicated region
        $region69: #{bsr_forward.1} parent=55 // pred_check
          %p1916 = pneg %p296
        $region70: #{bsr_forward.1} parent=55 // pred_check_branch
          %1918 = sbr.rel (%p1916) target = $region72
        $region71: #{bsr_forward.1} parent=55 // pred_region
          %s1920 = ssub.s32 384, 384
          %1921 = vsyncadd %s1906, %s1920
          %s1922 = smul.addr %s27, 3
          %s1923 = smul.addr %s1922, 128
          %s1924 = scalar_lea.hbm %s11, %s1923
          %s1925 = sshll.u32 %s1909, 4
          %s1926 = int_to_ptr.vmem [resolvable:$true] %s1925
          %1931 = dma.vmem_to_hbm [thread:$0]  %s1926, 384, %s1924, %s1906, 128, 128, 8
        $region72: #{bsr_forward.1} parent=55 // pred_fallthru
          _
      $region56: #{bsr_forward.1} parent=5 // pred_fallthru
        _
      %p1932 = scmp.le.s32.totalorder 2, %s22
      // Predicated region
      $region73: #{bsr_forward.1} parent=5 // pred_check
        %p1933 = pneg %p1932
      $region74: #{bsr_forward.1} parent=5 // pred_check_branch
        %1935 = sbr.rel (%p1933) target = $region76
      $region75: #{bsr_forward.1} parent=5 // pred_region
        %s1936 = ssub.s32 %s22, 2
        // Predicated region
        $region77: #{bsr_forward.1} parent=75 // pred_check
          %p1937 = pneg %p250
        $region78: #{bsr_forward.1} parent=75 // pred_check_branch
          %1939 = sbr.rel (%p1937) target = $region80
        $region79: #{bsr_forward.1} parent=75 // pred_region
          %p1940 = scmp.lt.s32.totalorder %s28, 1
          %s1941 = scalar_select %p1940, %s28, 1
          %s1942 = smul.addr %s1941, 4
          %s1943 = smul.addr %s1942, 8
          %s1944 = scalar_lea.vmem %s9, %s1943
        $region80: #{bsr_forward.1} parent=75 // pred_fallthru
          _
        // Predicated region
        $region81: #{bsr_forward.1} parent=75 // pred_check
          %p1945 = pneg %p276
        $region82: #{bsr_forward.1} parent=75 // pred_check_branch
          %1947 = sbr.rel (%p1945) target = $region84
        $region83: #{bsr_forward.1} parent=75 // pred_region
          %p1948 = scmp.lt.s32.totalorder %s28, 1
          %s1949 = scalar_select %p1948, %s28, 1
          %s1950 = smul.addr %s1949, 4
          %s1951 = smul.addr %s1950, 8
          %s1952 = scalar_lea.vmem %s10, %s1951
        $region84: #{bsr_forward.1} parent=75 // pred_fallthru
          _
        // Predicated region
        $region85: #{bsr_forward.1} parent=75 // pred_check
          %p1953 = pneg %p302
        $region86: #{bsr_forward.1} parent=75 // pred_check_branch
          %1955 = sbr.rel (%p1953) target = $region88
        $region87: #{bsr_forward.1} parent=75 // pred_region
          %s1956 = sand.u32 %s287, 1
          %s1957 = scalar_lea.sflag [#allocation3], %s1956
          %s1958 = sand.u32 %s287, 1
          %s1959 = smul.addr %s1958, 24
          %s1960 = scalar_lea.vmem [#allocation5], %s1959
          %1961 = dma.done %s1957, 384
        $region88: #{bsr_forward.1} parent=75 // pred_fallthru
          _
      $region76: #{bsr_forward.1} parent=5 // pred_fallthru
        _
    $region6: #{bsr_forward.1} parent=1 // loop_footer
      %s26 = sadd.s32 1, %s22
    $region7: #{bsr_forward.1} parent=1 // loop_footer_branch
      %21 = sbr.rel target = $region3
    $region8: #{bsr_forward.1} parent=1 // loop_exit
      _
    %1962 = vsyncpa [#allocation3], 1
    %s1963 = scalar_lea.sflag [#allocation3], 1
    %1964 = vsyncpa %s1963, 1
    %1965 = vsyncpa [#allocation4], 1
    %s1966 = scalar_lea.sflag [#allocation4], 1
    %1967 = vsyncpa %s1966, 1

</llo_original>
